<compile_context>
chip_gen: v5e
topology: v5e:2x2
jax: 0.10.0
libtpu: 0.0.40
codegen_flags: <defaults>
</compile_context>

<pallas_src>
import jax
import jax.numpy as jnp
from jax.experimental import pallas as pl
from jax.experimental.pallas import tpu as pltpu


def _round_up(n, m):
    return ((n + m - 1) // m) * m


# ---------------------------------------------------------------------------
# Pallas kernel: fused paired affine coupling on one batch tile
# ---------------------------------------------------------------------------
def _prcl_kernel(x_ref, w1_ref, b1_ref, w2_ref, b2_ref, out_ref, logdet_ref):
    V = x_ref.shape[1]

    x = x_ref[...]                                    # [TN, V] f32, original order

    # coupling 1: (s1|t1) over the full feature width; B lanes get s=0, t=0.
    st1 = jnp.dot(x.astype(jnp.bfloat16), w1_ref[...],
                  preferred_element_type=jnp.float32) + b1_ref[...]
    s1 = st1[:, :V]                                   # static lane-aligned slices
    t1 = st1[:, V:]
    y1 = x * jnp.exp(s1) + t1                         # A lanes -> A_new, B lanes exact pass-through

    # coupling 2: driven by A_new (zero rows on B lanes); A lanes get s=0, t=0.
    st2 = jnp.dot(y1.astype(jnp.bfloat16), w2_ref[...],
                  preferred_element_type=jnp.float32) + b2_ref[...]
    s2 = st2[:, :V]
    t2 = st2[:, V:]
    out_ref[...] = y1 * jnp.exp(s2) + t2              # lane-dense [TN, V], original order

    # logdet per row: zero lanes contribute nothing to the sums.
    logdet_ref[...] = (jnp.sum(s1, axis=-1, keepdims=True)
                       + jnp.sum(s2, axis=-1, keepdims=True))


def _pick_tile_n(N, max_tile=512):
    """Batch tile: big (amortize per-step overhead), multiple of 8, grid >= 2."""
    if N <= 16:
        return N                                       # single block == full dim
    half = _round_up(pl.cdiv(N, 2), 8)                 # keep >= 2 blocks (v7x: 2 TCs)
    return max(8, min(max_tile, half))


def _prcl_pallas(x, w1, b1, w2, b2, *, max_tile_n=512):
    """x: [N, V] f32 in ORIGINAL feature order. w*: [V, 2V] bf16, b*: [1, 2V] f32."""
    N, V = x.shape
    tile_n = _pick_tile_n(N, max_tile_n)
    grid = (pl.cdiv(N, tile_n),)                       # ragged last block handled by Pallas

    x_spec = pl.BlockSpec((tile_n, V), lambda i: (i, 0))
    w_spec = pl.BlockSpec((V, 2 * V), lambda i: (0, 0))    # VMEM-resident across grid
    b_spec = pl.BlockSpec((1, 2 * V), lambda i: (0, 0))
    out_spec = pl.BlockSpec((tile_n, V), lambda i: (i, 0))
    ld_spec = pl.BlockSpec((tile_n, 1), lambda i: (i, 0))

    out, logdet = pl.pallas_call(
        _prcl_kernel,
        out_shape=(
            jax.ShapeDtypeStruct((N, V), jnp.float32),
            jax.ShapeDtypeStruct((N, 1), jnp.float32),
        ),
        grid_spec=pltpu.PrefetchScalarGridSpec(
            num_scalar_prefetch=0,
            grid=grid,
            in_specs=[x_spec, w_spec, b_spec, w_spec, b_spec],
            out_specs=[out_spec, ld_spec],
        ),
        compiler_params=pltpu.CompilerParams(
            dimension_semantics=("parallel",),          # batch axis: megacore-shardable
            vmem_limit_bytes=32 * 1024 * 1024,
        ),
    )(x, w1, b1, w2, b2)
    return out, logdet.reshape(N)                       # (N,1)->(N,) is a free reshape


# ---------------------------------------------------------------------------
# PRCL module: deterministic init, partition folded into zero-padded weights
# ---------------------------------------------------------------------------
class PRCLPallas:
    def __init__(self, V, key):
        assert V % 2 == 0
        self.V = V
        H = V // 2
        self.H = H
        k_mask, k1, k2, k3, k4 = jax.random.split(key, 5)

        # Random-but-fixed boolean partition (mirrors torch mask + randperm):
        # True -> A partition, False -> B partition.
        base = jnp.arange(V) >= (V // 2)
        self.mask = base[jax.random.permutation(k_mask, V)]
        self.idx_a = jnp.nonzero(self.mask, size=H)[0]
        self.idx_b = jnp.nonzero(~self.mask, size=H)[0]

        def lin(k):
            kw, kb = jax.random.split(k)
            w = (0.25 / jnp.sqrt(H)) * jax.random.normal(kw, (H, H), jnp.float32)
            b = 0.1 * jax.random.normal(kb, (H,), jnp.float32)
            return w, b

        ws1, bs1 = lin(k1)   # c1 scale net   (input B, output on A lanes)
        wt1, bt1 = lin(k2)   # c1 translate net
        ws2, bs2 = lin(k3)   # c2 scale net   (input A_new, output on B lanes)
        wt2, bt2 = lin(k4)   # c2 translate net
        self._compact = (ws1, bs1, wt1, bt1, ws2, bs2, wt2, bt2)

        def fold(w_s, b_s, w_t, b_t, in_idx, out_idx):
            # Scatter compact [H,H] weights into a zero [V,V] slab so the kernel
            # works in original feature order: rows select the input partition,
            # columns place the result on the output partition.  All other
            # lanes get s = 0 / t = 0 -> exact identity in x*exp(s)+t.
            rows = in_idx[:, None]
            cols = out_idx[None, :]
            Ws = jnp.zeros((V, V), jnp.float32).at[rows, cols].set(w_s)
            Wt = jnp.zeros((V, V), jnp.float32).at[rows, cols].set(w_t)
            bs = jnp.zeros((V,), jnp.float32).at[out_idx].set(b_s)
            bt = jnp.zeros((V,), jnp.float32).at[out_idx].set(b_t)
            W = jnp.concatenate([Ws, Wt], axis=1).astype(jnp.bfloat16)  # [V, 2V]
            b = jnp.concatenate([bs, bt])[None, :]                       # [1, 2V] f32
            return W, b

        self.w1, self.b1 = fold(ws1, bs1, wt1, bt1, self.idx_b, self.idx_a)
        self.w2, self.b2 = fold(ws2, bs2, wt2, bt2, self.idx_a, self.idx_b)

    def __call__(self, x):
        # x: [batch, V] in original feature order; no gathers / pads outside the kernel.
        return _prcl_pallas(x, self.w1, self.b1, self.w2, self.b2)

    # Pure-JAX mirror with matching numerics (bf16 matmul operands, f32
    # accumulation / elementwise) used to validate the kernel.
    def reference(self, x):
        ws1, bs1, wt1, bt1, ws2, bs2, wt2, bt2 = self._compact
        bf = jnp.bfloat16
        A = x[:, self.idx_a]
        B = x[:, self.idx_b]
        s1 = jnp.dot(B.astype(bf), ws1.astype(bf),
                     preferred_element_type=jnp.float32) + bs1
        t1 = jnp.dot(B.astype(bf), wt1.astype(bf),
                     preferred_element_type=jnp.float32) + bt1
        A_new = A * jnp.exp(s1) + t1
        s2 = jnp.dot(A_new.astype(bf), ws2.astype(bf),
                     preferred_element_type=jnp.float32) + bs2
        t2 = jnp.dot(A_new.astype(bf), wt2.astype(bf),
                     preferred_element_type=jnp.float32) + bt2
        B_new = B * jnp.exp(s2) + t2
        out = jnp.zeros_like(x)
        out = out.at[:, self.idx_a].set(A_new)
        out = out.at[:, self.idx_b].set(B_new)
        return out, jnp.sum(s1, axis=-1) + jnp.sum(s2, axis=-1)


if __name__ == "__main__":
    key = jax.random.PRNGKey(0)
    k_init, k_x = jax.random.split(key)

    V = 256        # feature dim -> H = 128 features per partition
    batch = 200    # exercises tile picking (grid = 2) + a ragged last block

    model = PRCLPallas(V, k_init)
    x = jax.random.normal(k_x, (batch, V), dtype=jnp.float32)

    out, logdet = model(x)
    out, logdet = jax.block_until_ready((out, logdet))

    out_ref, logdet_ref = model.reference(x)
    assert out.shape == (batch, V) and logdet.shape == (batch,)
    assert jnp.allclose(out, out_ref, atol=5e-3, rtol=5e-3), \
        float(jnp.max(jnp.abs(out - out_ref)))
    assert jnp.allclose(logdet, logdet_ref, atol=5e-3, rtol=5e-3), \
        float(jnp.max(jnp.abs(logdet - logdet_ref)))

    print("KERNEL_OK")
</pallas_src>

<mosaic_0001>
module attributes {stable_mosaic.version = 11 : i64} {
  func.func @_prcl_kernel(%arg0: i32, %arg1: memref<104x256xf32, #tpu.memory_space<vmem>>, %arg2: memref<256x512xbf16, #tpu.memory_space<vmem>>, %arg3: memref<1x512xf32, #tpu.memory_space<vmem>>, %arg4: memref<256x512xbf16, #tpu.memory_space<vmem>>, %arg5: memref<1x512xf32, #tpu.memory_space<vmem>>, %arg6: memref<104x256xf32, #tpu.memory_space<vmem>>, %arg7: memref<104x1xf32, #tpu.memory_space<vmem>>) attributes {dimension_semantics = [#tpu.dimension_semantics<parallel>], iteration_bounds = array<i64: 2>, scalar_prefetch = 0 : i64, scratch_operands = 0 : i64, tpu.core_type = #tpu.core_type<tc>, window_params = [{transform_indices = @transform_0, window_bounds = array<i64: 104, 256>}, {pipeline_mode = #tpu.pipeline_mode<synchronous>, transform_indices = @transform_1, window_bounds = array<i64: 256, 512>}, {pipeline_mode = #tpu.pipeline_mode<synchronous>, transform_indices = @transform_2, window_bounds = array<i64: 1, 512>}, {pipeline_mode = #tpu.pipeline_mode<synchronous>, transform_indices = @transform_3, window_bounds = array<i64: 256, 512>}, {pipeline_mode = #tpu.pipeline_mode<synchronous>, transform_indices = @transform_4, window_bounds = array<i64: 1, 512>}, {transform_indices = @transform_5, window_bounds = array<i64: 104, 256>}, {transform_indices = @transform_6, window_bounds = array<i64: 104, 1>}]} {
    %c0 = arith.constant 0 : index
    %c0_0 = arith.constant 0 : index
    %0 = vector.load %arg1[%c0, %c0_0] : memref<104x256xf32, #tpu.memory_space<vmem>>, vector<104x256xf32>
    %1 = arith.truncf %0 : vector<104x256xf32> to vector<104x256xbf16>
    %c0_1 = arith.constant 0 : index
    %c0_2 = arith.constant 0 : index
    %2 = vector.load %arg2[%c0_1, %c0_2] : memref<256x512xbf16, #tpu.memory_space<vmem>>, vector<256x512xbf16>
    %cst = arith.constant dense<0.000000e+00> : vector<104x512xf32>
    %3 = tpu.matmul %1, %2, %cst {dimension_numbers = #tpu.dot_dimension_numbers<[1], [0], [0], [1], [0, 0, 1, 1], [], []>} : vector<104x256xbf16>, vector<256x512xbf16>, vector<104x512xf32> -> vector<104x512xf32>
    %c0_3 = arith.constant 0 : index
    %c0_4 = arith.constant 0 : index
    %4 = vector.load %arg3[%c0_3, %c0_4] : memref<1x512xf32, #tpu.memory_space<vmem>>, vector<1x512xf32>
    %5 = vector.broadcast %4 : vector<1x512xf32> to vector<104x512xf32>
    %6 = arith.addf %3, %5 : vector<104x512xf32>
    %7 = vector.extract_strided_slice %6 {offsets = [0, 0], sizes = [104, 256], strides = [1, 1]} : vector<104x512xf32> to vector<104x256xf32>
    %8 = vector.extract_strided_slice %6 {offsets = [0, 256], sizes = [104, 256], strides = [1, 1]} : vector<104x512xf32> to vector<104x256xf32>
    %9 = math.exp %7 : vector<104x256xf32>
    %10 = arith.mulf %0, %9 : vector<104x256xf32>
    %11 = arith.addf %10, %8 : vector<104x256xf32>
    %12 = arith.truncf %11 : vector<104x256xf32> to vector<104x256xbf16>
    %c0_5 = arith.constant 0 : index
    %c0_6 = arith.constant 0 : index
    %13 = vector.load %arg4[%c0_5, %c0_6] : memref<256x512xbf16, #tpu.memory_space<vmem>>, vector<256x512xbf16>
    %cst_7 = arith.constant dense<0.000000e+00> : vector<104x512xf32>
    %14 = tpu.matmul %12, %13, %cst_7 {dimension_numbers = #tpu.dot_dimension_numbers<[1], [0], [0], [1], [0, 0, 1, 1], [], []>} : vector<104x256xbf16>, vector<256x512xbf16>, vector<104x512xf32> -> vector<104x512xf32>
    %c0_8 = arith.constant 0 : index
    %c0_9 = arith.constant 0 : index
    %15 = vector.load %arg5[%c0_8, %c0_9] : memref<1x512xf32, #tpu.memory_space<vmem>>, vector<1x512xf32>
    %16 = vector.broadcast %15 : vector<1x512xf32> to vector<104x512xf32>
    %17 = arith.addf %14, %16 : vector<104x512xf32>
    %18 = vector.extract_strided_slice %17 {offsets = [0, 0], sizes = [104, 256], strides = [1, 1]} : vector<104x512xf32> to vector<104x256xf32>
    %19 = vector.extract_strided_slice %17 {offsets = [0, 256], sizes = [104, 256], strides = [1, 1]} : vector<104x512xf32> to vector<104x256xf32>
    %20 = math.exp %18 : vector<104x256xf32>
    %21 = arith.mulf %11, %20 : vector<104x256xf32>
    %22 = arith.addf %21, %19 : vector<104x256xf32>
    %c0_10 = arith.constant 0 : index
    %c0_11 = arith.constant 0 : index
    %23 = vector.load %arg6[%c0_10, %c0_11] : memref<104x256xf32, #tpu.memory_space<vmem>>, vector<104x256xf32>
    tpu.vector_store %arg6[%c0_10, %c0_11], %22 {strides = array<i32>} : memref<104x256xf32, #tpu.memory_space<vmem>>, vector<104x256xf32>,
    %cst_12 = arith.constant dense<0.000000e+00> : vector<104xf32>
    %24 = vector.multi_reduction <add>, %7, %cst_12 [1] : vector<104x256xf32> to vector<104xf32>
    %25 = vector.shape_cast %24 : vector<104xf32> to vector<104x1xf32>
    %cst_13 = arith.constant dense<0.000000e+00> : vector<104xf32>
    %26 = vector.multi_reduction <add>, %18, %cst_13 [1] : vector<104x256xf32> to vector<104xf32>
    %27 = vector.shape_cast %26 : vector<104xf32> to vector<104x1xf32>
    %28 = arith.addf %25, %27 : vector<104x1xf32>
    %c0_14 = arith.constant 0 : index
    %c0_15 = arith.constant 0 : index
    %29 = vector.load %arg7[%c0_14, %c0_15] : memref<104x1xf32, #tpu.memory_space<vmem>>, vector<104x1xf32>
    tpu.vector_store %arg7[%c0_14, %c0_15], %28 {strides = array<i32>} : memref<104x1xf32, #tpu.memory_space<vmem>>, vector<104x1xf32>,
    return
  }
  func.func @transform_0(%arg0: i32) -> (i32, i32) {
    %c0_i32 = arith.constant 0 : i32
    %c0_i32_0 = arith.constant 0 : i32
    return %arg0, %c0_i32 : i32, i32
  }
  func.func @transform_1(%arg0: i32) -> (i32, i32) {
    %c0_i32 = arith.constant 0 : i32
    %c0_i32_0 = arith.constant 0 : i32
    %c0_i32_1 = arith.constant 0 : i32
    return %c0_i32, %c0_i32_0 : i32, i32
  }
  func.func @transform_2(%arg0: i32) -> (i32, i32) {
    %c0_i32 = arith.constant 0 : i32
    %c0_i32_0 = arith.constant 0 : i32
    %c0_i32_1 = arith.constant 0 : i32
    return %c0_i32, %c0_i32_0 : i32, i32
  }
  func.func @transform_3(%arg0: i32) -> (i32, i32) {
    %c0_i32 = arith.constant 0 : i32
    %c0_i32_0 = arith.constant 0 : i32
    %c0_i32_1 = arith.constant 0 : i32
    return %c0_i32, %c0_i32_0 : i32, i32
  }
  func.func @transform_4(%arg0: i32) -> (i32, i32) {
    %c0_i32 = arith.constant 0 : i32
    %c0_i32_0 = arith.constant 0 : i32
    %c0_i32_1 = arith.constant 0 : i32
    return %c0_i32, %c0_i32_0 : i32, i32
  }
  func.func @transform_5(%arg0: i32) -> (i32, i32) {
    %c0_i32 = arith.constant 0 : i32
    %c0_i32_0 = arith.constant 0 : i32
    return %arg0, %c0_i32 : i32, i32
  }
  func.func @transform_6(%arg0: i32) -> (i32, i32) {
    %c0_i32 = arith.constant 0 : i32
    %c0_i32_0 = arith.constant 0 : i32
    return %arg0, %c0_i32 : i32, i32
  }
}

</mosaic_0001>

<llo_original>
// kernel: tpu_custom_call.1
$region0: #{tpu_custom_call.1}
  #allocation0 [shape = 'u32[]', space=smem, size = 0x4, offset = 0x4, fixed_abs, tag = 'smem constant byte address 0x4 - core index']
  #allocation1 [shape = 'u32[72,128]{1,0:T(1,128)}', space=vmem, size = 0x9000, scoped, tag = 'internal scratch']
  %s0 = inlined_call_operand.hbm [shape: f32[200,256], index: 0, kind: input, shape index: {}]
  %s1 = inlined_call_operand.hbm [shape: bf16[256,512], index: 1, kind: input, shape index: {}]
  %s2 = inlined_call_operand.hbm [shape: f32[1,512], index: 2, kind: input, shape index: {}]
  %s3 = inlined_call_operand.hbm [shape: bf16[256,512], index: 3, kind: input, shape index: {}]
  %s4 = inlined_call_operand.hbm [shape: f32[1,512], index: 4, kind: input, shape index: {}]
  %s5 = inlined_call_operand.hbm [shape: f32[200,256], index: 5, kind: output, shape index: {0}]
  %s6 = inlined_call_operand.vmem [shape: f32[200,1], index: 6, kind: output, shape index: {1}]
  %7 = xla_tuple %s5, %s6
  %s8 = sld [smem:[#allocation0]]
  $region129: #{tpu_custom_call.1} parent=0
    _
  %s10 = ssub.s32 1, %s8
  %s11 = scalar_select 0, %s10, %s8
  $region1: #{tpu_custom_call.1} parent=0
    #allocation2 [shape = 'u8[212992]{0}', space=vmem, size = 0x34000, scoped, tag = 'input window, operand 0']
    #allocation3 [shape = 's32[2]{0}', space=sflag, size = 0x8, scoped, tag = 'scoped memory for tpu_custom_call.1']
    #allocation4 [shape = 's32[2]{0}', space=sflag, size = 0x8, scoped, tag = 'scoped memory for tpu_custom_call.1']
    #allocation5 [shape = 'u8[262144]{0}', space=vmem, size = 0x40000, scoped, tag = 'input window, operand 1, single buffered']
    #allocation6 [shape = 's32[1]{0}', space=sflag, size = 0x4, scoped, tag = 'scoped memory for tpu_custom_call.1']
    #allocation7 [shape = 'u8[2048]{0}', space=vmem, size = 0x800, scoped, tag = 'input window, operand 2, single buffered']
    #allocation8 [shape = 'u8[262144]{0}', space=vmem, size = 0x40000, scoped, tag = 'input window, operand 3, single buffered']
    #allocation9 [shape = 's32[1]{0}', space=sflag, size = 0x4, scoped, tag = 'scoped memory for tpu_custom_call.1']
    #allocation10 [shape = 'u8[2048]{0}', space=vmem, size = 0x800, scoped, tag = 'input window, operand 4, single buffered']
    #allocation11 [shape = 'u8[212992]{0}', space=vmem, size = 0x34000, scoped, tag = 'output window, operand 0']
    #allocation12 [shape = 'u8[106496]{0}', space=vmem, size = 0x1a000, scoped, tag = 'output window, operand 1']
    %12 = vsyncpa [#allocation3], 0
    %s13 = scalar_lea.sflag [#allocation3], 1
    %14 = vsyncpa %s13, 0
    %15 = vsyncpa [#allocation6], 0
    %16 = vsyncpa [#allocation9], 0
    %17 = vsyncpa [#allocation4], 0
    %s18 = scalar_lea.sflag [#allocation4], 1
    %19 = vsyncpa %s18, 0
    loop: start=0, step=1, limit=4
    $region2: #{tpu_custom_call.1} parent=1 // loop_pre_header
      _
    $region3: #{tpu_custom_call.1} parent=1 // loop_header
      %s21 = sphi 0, %s25
      %p22 = scmp.ge.s32.totalorder %s21, 4
      %s31 = sphi 0, %s33
      %s34 = sphi 0, %s31
      %s35 = sphi 0, %s34
      %s51 = sphi 0, %s35
      %s55 = sphi 0, %s55
      %s57 = sphi 0, %s55
      %s58 = sphi 0, %s57
      %s72 = sphi 0, %s58
      %s76 = sphi 0, %s76
      %s78 = sphi 0, %s76
      %s79 = sphi 0, %s78
      %s93 = sphi 0, %s79
      %s97 = sphi 0, %s97
      %s99 = sphi 0, %s97
      %s100 = sphi 0, %s99
      %s114 = sphi 0, %s100
      %s118 = sphi 0, %s118
      %s120 = sphi 0, %s118
      %s121 = sphi 0, %s120
      %s135 = sphi 0, %s121
      %s141 = sphi 0, %s143
      %s144 = sphi 0, %s141
      %s145 = sphi 0, %s144
      %s161 = sphi 0, %s145
      %s167 = sphi 0, %s169
      %s170 = sphi 0, %s167
      %s171 = sphi 0, %s170
      %s187 = sphi 0, %s171
    $region4: #{tpu_custom_call.1} parent=1 // loop_header_branch
      %24 = sbr.rel (%p22) target = $region8
    $region5: #{tpu_custom_call.1} parent=1 // loop_body
      %s26 = ssub.s32 %s21, 1
      %s27 = ssub.s32 %s21, 2
      %s28 = sadd.s32 %s21, 1
      %s29 = ssub.s32 %s21, %s28
      %p30 = scmp.eq.s32.totalorder %s29, 0
      %s32 = sadd.s32 %s31, 1
      %s33 = scalar_select %p30, %s31, %s32
      %p36 = pneg %p30
      %p37 = scmp.eq.s32.totalorder %s21, 1
      %p38 = por %p36, %p37
      %p39 = scmp.ne.s32.totalorder %s31, %s34
      %p40 = scmp.eq.s32.totalorder %s21, 0
      %p41 = por %p39, %p40
      %p42 = scmp.ne.s32.totalorder %s31, %s34
      %p43 = scmp.eq.s32.totalorder %s26, 1
      %p44 = por %p42, %p43
      %p45 = scmp.ne.s32.totalorder %s34, %s35
      %p46 = scmp.eq.s32.totalorder %s26, 0
      %p47 = por %p45, %p46
      %p48 = scmp.ne.s32.totalorder %s34, %s35
      %p49 = scmp.eq.s32.totalorder %s27, 1
      %p50 = por %p48, %p49
      %p52 = scmp.ne.s32.totalorder %s35, %s51
      %p53 = scmp.eq.s32.totalorder %s27, 0
      %p54 = por %p52, %p53
      %s56 = sadd.s32 %s55, 1
      %p59 = scmp.eq.s32.totalorder %s21, 1
      %p60 = scmp.ne.s32.totalorder %s55, %s57
      %p61 = scmp.eq.s32.totalorder %s21, 0
      %p62 = por %p60, %p61
      %p63 = scmp.ne.s32.totalorder %s55, %s57
      %p64 = scmp.eq.s32.totalorder %s26, 1
      %p65 = por %p63, %p64
      %p66 = scmp.ne.s32.totalorder %s57, %s58
      %p67 = scmp.eq.s32.totalorder %s26, 0
      %p68 = por %p66, %p67
      %p69 = scmp.ne.s32.totalorder %s57, %s58
      %p70 = scmp.eq.s32.totalorder %s27, 1
      %p71 = por %p69, %p70
      %p73 = scmp.ne.s32.totalorder %s58, %s72
      %p74 = scmp.eq.s32.totalorder %s27, 0
      %p75 = por %p73, %p74
      %s77 = sadd.s32 %s76, 1
      %p80 = scmp.eq.s32.totalorder %s21, 1
      %p81 = scmp.ne.s32.totalorder %s76, %s78
      %p82 = scmp.eq.s32.totalorder %s21, 0
      %p83 = por %p81, %p82
      %p84 = scmp.ne.s32.totalorder %s76, %s78
      %p85 = scmp.eq.s32.totalorder %s26, 1
      %p86 = por %p84, %p85
      %p87 = scmp.ne.s32.totalorder %s78, %s79
      %p88 = scmp.eq.s32.totalorder %s26, 0
      %p89 = por %p87, %p88
      %p90 = scmp.ne.s32.totalorder %s78, %s79
      %p91 = scmp.eq.s32.totalorder %s27, 1
      %p92 = por %p90, %p91
      %p94 = scmp.ne.s32.totalorder %s79, %s93
      %p95 = scmp.eq.s32.totalorder %s27, 0
      %p96 = por %p94, %p95
      %s98 = sadd.s32 %s97, 1
      %p101 = scmp.eq.s32.totalorder %s21, 1
      %p102 = scmp.ne.s32.totalorder %s97, %s99
      %p103 = scmp.eq.s32.totalorder %s21, 0
      %p104 = por %p102, %p103
      %p105 = scmp.ne.s32.totalorder %s97, %s99
      %p106 = scmp.eq.s32.totalorder %s26, 1
      %p107 = por %p105, %p106
      %p108 = scmp.ne.s32.totalorder %s99, %s100
      %p109 = scmp.eq.s32.totalorder %s26, 0
      %p110 = por %p108, %p109
      %p111 = scmp.ne.s32.totalorder %s99, %s100
      %p112 = scmp.eq.s32.totalorder %s27, 1
      %p113 = por %p111, %p112
      %p115 = scmp.ne.s32.totalorder %s100, %s114
      %p116 = scmp.eq.s32.totalorder %s27, 0
      %p117 = por %p115, %p116
      %s119 = sadd.s32 %s118, 1
      %p122 = scmp.eq.s32.totalorder %s21, 1
      %p123 = scmp.ne.s32.totalorder %s118, %s120
      %p124 = scmp.eq.s32.totalorder %s21, 0
      %p125 = por %p123, %p124
      %p126 = scmp.ne.s32.totalorder %s118, %s120
      %p127 = scmp.eq.s32.totalorder %s26, 1
      %p128 = por %p126, %p127
      %p129 = scmp.ne.s32.totalorder %s120, %s121
      %p130 = scmp.eq.s32.totalorder %s26, 0
      %p131 = por %p129, %p130
      %p132 = scmp.ne.s32.totalorder %s120, %s121
      %p133 = scmp.eq.s32.totalorder %s27, 1
      %p134 = por %p132, %p133
      %p136 = scmp.ne.s32.totalorder %s121, %s135
      %p137 = scmp.eq.s32.totalorder %s27, 0
      %p138 = por %p136, %p137
      %s139 = ssub.s32 %s21, %s28
      %p140 = scmp.eq.s32.totalorder %s139, 0
      %s142 = sadd.s32 %s141, 1
      %s143 = scalar_select %p140, %s141, %s142
      %p146 = pneg %p140
      %p147 = scmp.eq.s32.totalorder %s21, 1
      %p148 = por %p146, %p147
      %p149 = scmp.ne.s32.totalorder %s141, %s144
      %p150 = scmp.eq.s32.totalorder %s21, 0
      %p151 = por %p149, %p150
      %p152 = scmp.ne.s32.totalorder %s141, %s144
      %p153 = scmp.eq.s32.totalorder %s26, 1
      %p154 = por %p152, %p153
      %p155 = scmp.ne.s32.totalorder %s144, %s145
      %p156 = scmp.eq.s32.totalorder %s26, 0
      %p157 = por %p155, %p156
      %p158 = scmp.ne.s32.totalorder %s144, %s145
      %p159 = scmp.eq.s32.totalorder %s27, 1
      %p160 = por %p158, %p159
      %p162 = scmp.ne.s32.totalorder %s145, %s161
      %p163 = scmp.eq.s32.totalorder %s27, 0
      %p164 = por %p162, %p163
      %s165 = ssub.s32 %s21, %s28
      %p166 = scmp.eq.s32.totalorder %s165, 0
      %s168 = sadd.s32 %s167, 1
      %s169 = scalar_select %p166, %s167, %s168
      %p172 = pneg %p166
      %p173 = scmp.eq.s32.totalorder %s21, 1
      %p174 = por %p172, %p173
      %p175 = scmp.ne.s32.totalorder %s167, %s170
      %p176 = scmp.eq.s32.totalorder %s21, 0
      %p177 = por %p175, %p176
      %p178 = scmp.ne.s32.totalorder %s167, %s170
      %p179 = scmp.eq.s32.totalorder %s26, 1
      %p180 = por %p178, %p179
      %p181 = scmp.ne.s32.totalorder %s170, %s171
      %p182 = scmp.eq.s32.totalorder %s26, 0
      %p183 = por %p181, %p182
      %p184 = scmp.ne.s32.totalorder %s170, %s171
      %p185 = scmp.eq.s32.totalorder %s27, 1
      %p186 = por %p184, %p185
      %p188 = scmp.ne.s32.totalorder %s171, %s187
      %p189 = scmp.eq.s32.totalorder %s27, 0
      %p190 = por %p188, %p189
      %p191 = scmp.le.s32.totalorder 1, %s21
      %p192 = scmp.lt.s32.totalorder %s21, 3
      %p193 = pnand %p191, %p192
      %p194 = pneg %p193
      // Predicated region
      $region9: #{tpu_custom_call.1} parent=5 // pred_check
        _
      $region10: #{tpu_custom_call.1} parent=5 // pred_check_branch
        %196 = sbr.rel (%p193) target = $region12
      $region11: #{tpu_custom_call.1} parent=5 // pred_region
        %s197 = ssub.s32 %s21, 1
        // Predicated region
        $region13: #{tpu_custom_call.1} parent=11 // pred_check
          %p198 = pneg %p68
        $region14: #{tpu_custom_call.1} parent=11 // pred_check_branch
          %200 = sbr.rel (%p198) target = $region16
        $region15: #{tpu_custom_call.1} parent=11 // pred_region
          %202 = vsyncadd [#allocation6], 0
          %s203 = sshll.u32 %s1, 4
          %s204 = int_to_ptr.hbm [resolvable:$true] %s203
          %s205 = sshll.u32 [#allocation5], 4
          %s206 = int_to_ptr.vmem [resolvable:$true] %s205
          %211 = dma.hbm_to_vmem [thread:$0]  %s204, 8192, %s206, [#allocation6], 256, 256, 16
        $region16: #{tpu_custom_call.1} parent=11 // pred_fallthru
          _
        // Predicated region
        $region17: #{tpu_custom_call.1} parent=11 // pred_check
          %p212 = pneg %p89
        $region18: #{tpu_custom_call.1} parent=11 // pred_check_branch
          %214 = sbr.rel (%p212) target = $region20
        $region19: #{tpu_custom_call.1} parent=11 // pred_region
          %216 = vsyncadd [#allocation6], 0
          %s218 = sshll.u32 %s2, 4
          %s219 = int_to_ptr.hbm [resolvable:$true] %s218
          %s220 = sshll.u32 [#allocation7], 4
          %s221 = int_to_ptr.vmem [resolvable:$true] %s220
          %223 = dma.hbm_to_vmem [thread:$0]  %s219, 64, %s221, [#allocation6]
        $region20: #{tpu_custom_call.1} parent=11 // pred_fallthru
          _
        // Predicated region
        $region21: #{tpu_custom_call.1} parent=11 // pred_check
          %p224 = pneg %p110
        $region22: #{tpu_custom_call.1} parent=11 // pred_check_branch
          %226 = sbr.rel (%p224) target = $region24
        $region23: #{tpu_custom_call.1} parent=11 // pred_region
          %228 = vsyncadd [#allocation9], 0
          %s229 = sshll.u32 %s3, 4
          %s230 = int_to_ptr.hbm [resolvable:$true] %s229
          %s231 = sshll.u32 [#allocation8], 4
          %s232 = int_to_ptr.vmem [resolvable:$true] %s231
          %237 = dma.hbm_to_vmem [thread:$0]  %s230, 8192, %s232, [#allocation9], 256, 256, 16
        $region24: #{tpu_custom_call.1} parent=11 // pred_fallthru
          _
        // Predicated region
        $region25: #{tpu_custom_call.1} parent=11 // pred_check
          %p238 = pneg %p131
        $region26: #{tpu_custom_call.1} parent=11 // pred_check_branch
          %240 = sbr.rel (%p238) target = $region28
        $region27: #{tpu_custom_call.1} parent=11 // pred_region
          %242 = vsyncadd [#allocation9], 0
          %s244 = sshll.u32 %s4, 4
          %s245 = int_to_ptr.hbm [resolvable:$true] %s244
          %s246 = sshll.u32 [#allocation10], 4
          %s247 = int_to_ptr.vmem [resolvable:$true] %s246
          %249 = dma.hbm_to_vmem [thread:$0]  %s245, 64, %s247, [#allocation9]
        $region28: #{tpu_custom_call.1} parent=11 // pred_fallthru
          _
      $region12: #{tpu_custom_call.1} parent=5 // pred_fallthru
        _
      %p250 = scmp.lt.s32.totalorder %s21, 2
      // Predicated region
      $region29: #{tpu_custom_call.1} parent=5 // pred_check
        %p251 = pneg %p250
      $region30: #{tpu_custom_call.1} parent=5 // pred_check_branch
        %253 = sbr.rel (%p251) target = $region32
      $region31: #{tpu_custom_call.1} parent=5 // pred_region
        // Predicated region
        $region33: #{tpu_custom_call.1} parent=31 // pred_check
          %p254 = pneg %p41
        $region34: #{tpu_custom_call.1} parent=31 // pred_check_branch
          %256 = sbr.rel (%p254) target = $region36
        $region35: #{tpu_custom_call.1} parent=31 // pred_region
          %s257 = sand.u32 %s31, 1
          %s258 = scalar_lea.sflag [#allocation3], %s257
          %s259 = sand.u32 %s31, 1
          %s260 = smul.addr %s259, 208
          %s261 = scalar_lea.vmem [#allocation2], %s260
          %s262 = smul.u32 13, %s21
          %s263 = ssub.s32 25, %s262
          %p264 = scmp.lt.s32.totalorder %s263, 13
          %s265 = scalar_select %p264, %s263, 13
          %s266 = smul.u32 8, %s265
          %s267 = smul.u32 %s266, 2
          %s268 = ssub.s32 208, %s267
          %s269 = sshll.u32 %s268, 4
          %270 = vsyncadd %s258, %s269
          %p271 = scmp.ne.s32.totalorder 0, %s267
          %s272 = smul.addr %s262, 2
          %s273 = smul.addr %s272, 8
          %s274 = scalar_lea.hbm %s0, %s273
          %s275 = smul.u32 16, %s265
          %s276 = sshll.u32 %s274, 4
          %s277 = int_to_ptr.hbm [resolvable:$true] %s276
          %s278 = sshll.u32 %s261, 4
          %s279 = int_to_ptr.vmem [resolvable:$true] %s278
          %s280 = sshll.u32 %s275, 4
          %284 = dma.hbm_to_vmem [thread:$0]  (%p271), %s277, %s280, %s279, %s258, 256, 256, 16
        $region36: #{tpu_custom_call.1} parent=31 // pred_fallthru
          _
      $region32: #{tpu_custom_call.1} parent=5 // pred_fallthru
        _
      %p285 = scmp.le.s32.totalorder 1, %s21
      %p286 = scmp.lt.s32.totalorder %s21, 3
      %p287 = pnand %p285, %p286
      %p288 = pneg %p287
      // Predicated region
      $region37: #{tpu_custom_call.1} parent=5 // pred_check
        _
      $region38: #{tpu_custom_call.1} parent=5 // pred_check_branch
        %290 = sbr.rel (%p287) target = $region40
      $region39: #{tpu_custom_call.1} parent=5 // pred_region
        %s291 = ssub.s32 %s21, 1
        %s292 = sand.u32 %s34, 1
        %s293 = scalar_lea.sflag [#allocation3], %s292
        %s294 = sand.u32 %s34, 1
        %s295 = smul.addr %s294, 208
        %s296 = scalar_lea.vmem [#allocation2], %s295
        // Predicated region
        $region41: #{tpu_custom_call.1} parent=39 // pred_check
          %p297 = pneg %p47
        $region42: #{tpu_custom_call.1} parent=39 // pred_check_branch
          %299 = sbr.rel (%p297) target = $region44
        $region43: #{tpu_custom_call.1} parent=39 // pred_region
          %301 = dma.done %s293, 3328
        $region44: #{tpu_custom_call.1} parent=39 // pred_fallthru
          _
        // Predicated region
        $region45: #{tpu_custom_call.1} parent=39 // pred_check
          %p302 = pneg %p68
        $region46: #{tpu_custom_call.1} parent=39 // pred_check_branch
          %304 = sbr.rel (%p302) target = $region48
        $region47: #{tpu_custom_call.1} parent=39 // pred_region
          %306 = dma.done [#allocation6], 8192
        $region48: #{tpu_custom_call.1} parent=39 // pred_fallthru
          _
        // Predicated region
        $region49: #{tpu_custom_call.1} parent=39 // pred_check
          %p307 = pneg %p89
        $region50: #{tpu_custom_call.1} parent=39 // pred_check_branch
          %309 = sbr.rel (%p307) target = $region52
        $region51: #{tpu_custom_call.1} parent=39 // pred_region
          %311 = dma.done [#allocation6], 64
        $region52: #{tpu_custom_call.1} parent=39 // pred_fallthru
          _
        // Predicated region
        $region53: #{tpu_custom_call.1} parent=39 // pred_check
          %p312 = pneg %p110
        $region54: #{tpu_custom_call.1} parent=39 // pred_check_branch
          %314 = sbr.rel (%p312) target = $region56
        $region55: #{tpu_custom_call.1} parent=39 // pred_region
          %316 = dma.done [#allocation9], 8192
        $region56: #{tpu_custom_call.1} parent=39 // pred_fallthru
          _
        // Predicated region
        $region57: #{tpu_custom_call.1} parent=39 // pred_check
          %p317 = pneg %p131
        $region58: #{tpu_custom_call.1} parent=39 // pred_check_branch
          %319 = sbr.rel (%p317) target = $region60
        $region59: #{tpu_custom_call.1} parent=39 // pred_region
          %321 = dma.done [#allocation9], 64
        $region60: #{tpu_custom_call.1} parent=39 // pred_fallthru
          _
        %s322 = sand.u32 %s34, 1
        %s323 = scalar_lea.sflag [#allocation3], %s322
        %s324 = sand.u32 %s34, 1
        %s325 = smul.addr %s324, 208
        %s326 = scalar_lea.vmem [#allocation2], %s325
        %p327 = pneg %p47
        %p328 = pneg %p44
        %p329 = pneg %p68
        %p330 = pneg %p65
        %p331 = pneg %p89
        %p332 = pneg %p86
        %p333 = pneg %p110
        %p334 = pneg %p107
        %p335 = pneg %p131
        %p336 = pneg %p128
        %p337 = pneg %p157
        %p338 = pneg %p154
        %s339 = sand.u32 %s144, 1
        %s340 = scalar_lea.sflag [#allocation4], %s339
        %s341 = sand.u32 %s144, 1
        %s342 = smul.addr %s341, 208
        %s343 = scalar_lea.vmem [#allocation11], %s342
        %p344 = pneg %p183
        %p345 = pneg %p180
        %s346 = sand.u32 %s170, 1
        %s347 = sand.u32 %s170, 1
        %s348 = smul.addr %s347, 104
        %s349 = scalar_lea.vmem [#allocation12], %s348
        %s350 = smul.u32 13, %s26
        %s351 = ssub.s32 25, %s350
        %p352 = scmp.lt.s32.totalorder %s351, 13
        %s353 = scalar_select %p352, %s351, 13
        %s354 = smul.u32 8, %s353
        %s355 = smul.u32 %s354, 2
        %s356 = smul.u32 13, %s26
        %s357 = ssub.s32 25, %s356
        %p358 = scmp.lt.s32.totalorder %s357, 13
        %s359 = scalar_select %p358, %s357, 13
        %s360 = smul.u32 8, %s359
        %s361 = smul.u32 %s360, 2
        %s362 = smul.u32 13, %s26
        %s363 = ssub.s32 25, %s362
        %p364 = scmp.lt.s32.totalorder %s363, 13
        %s365 = scalar_select %p364, %s363, 13
        %s366 = smul.u32 8, %s365
        %v367 = vld [vmem:[%s296] sm:$0xff]
        %v368 = vld [vmem:[%s296 + $0x8] sm:$0xff]
        %v369 = vld [vmem:[%s296 + $0x10] sm:$0xff]
        %v370 = vld [vmem:[%s296 + $0x18] sm:$0xff]
        %v371 = vld [vmem:[%s296 + $0x20] sm:$0xff]
        %v372 = vld [vmem:[%s296 + $0x28] sm:$0xff]
        %v373 = vld [vmem:[%s296 + $0x30] sm:$0xff]
        %v374 = vld [vmem:[%s296 + $0x38] sm:$0xff]
        %v375 = vld [vmem:[%s296 + $0x40] sm:$0xff]
        %v376 = vld [vmem:[%s296 + $0x48] sm:$0xff]
        %v377 = vld [vmem:[%s296 + $0x50] sm:$0xff]
        %v378 = vld [vmem:[%s296 + $0x58] sm:$0xff]
        %v379 = vld [vmem:[%s296 + $0x60] sm:$0xff]
        %v380 = vld [vmem:[%s296 + $0x68] sm:$0xff]
        %v381 = vld [vmem:[%s296 + $0x70] sm:$0xff]
        %v382 = vld [vmem:[%s296 + $0x78] sm:$0xff]
        %v383 = vld [vmem:[%s296 + $0x80] sm:$0xff]
        %v384 = vld [vmem:[%s296 + $0x88] sm:$0xff]
        %v385 = vld [vmem:[%s296 + $0x90] sm:$0xff]
        %v386 = vld [vmem:[%s296 + $0x98] sm:$0xff]
        %v387 = vld [vmem:[%s296 + $0xa0] sm:$0xff]
        %v388 = vld [vmem:[%s296 + $0xa8] sm:$0xff]
        %v389 = vld [vmem:[%s296 + $0xb0] sm:$0xff]
        %v390 = vld [vmem:[%s296 + $0xb8] sm:$0xff]
        %v391 = vld [vmem:[%s296 + $0xc0] sm:$0xff]
        %v392 = vld [vmem:[%s296 + $0xc8] sm:$0xff]
        %v393 = vpack.c.bf16 %v369, %v367
        %v394 = vpack.c.bf16 %v370, %v368
        %v395 = vpack.c.bf16 %v373, %v371
        %v396 = vpack.c.bf16 %v374, %v372
        %v397 = vpack.c.bf16 %v377, %v375
        %v398 = vpack.c.bf16 %v378, %v376
        %v399 = vpack.c.bf16 %v381, %v379
        %v400 = vpack.c.bf16 %v382, %v380
        %v401 = vpack.c.bf16 %v385, %v383
        %v402 = vpack.c.bf16 %v386, %v384
        %v403 = vpack.c.bf16 %v389, %v387
        %v404 = vpack.c.bf16 %v390, %v388
        %v405 = vpack.c.bf16 %v391, %v391
        %v406 = vpack.c.bf16 %v392, %v392
        %v407 = vld [vmem:[#allocation5] sm:$0xff]
        %v408 = vld [vmem:[#allocation5 + $0x8] sm:$0xff]
        %v409 = vld [vmem:[#allocation5 + $0x10] sm:$0xff]
        %v410 = vld [vmem:[#allocation5 + $0x18] sm:$0xff]
        %v411 = vld [vmem:[#allocation5 + $0x20] sm:$0xff]
        %v412 = vld [vmem:[#allocation5 + $0x28] sm:$0xff]
        %v413 = vld [vmem:[#allocation5 + $0x30] sm:$0xff]
        %v414 = vld [vmem:[#allocation5 + $0x38] sm:$0xff]
        %v415 = vld [vmem:[#allocation5 + $0x40] sm:$0xff]
        %v416 = vld [vmem:[#allocation5 + $0x48] sm:$0xff]
        %v417 = vld [vmem:[#allocation5 + $0x50] sm:$0xff]
        %v418 = vld [vmem:[#allocation5 + $0x58] sm:$0xff]
        %v419 = vld [vmem:[#allocation5 + $0x60] sm:$0xff]
        %v420 = vld [vmem:[#allocation5 + $0x68] sm:$0xff]
        %v421 = vld [vmem:[#allocation5 + $0x70] sm:$0xff]
        %v422 = vld [vmem:[#allocation5 + $0x78] sm:$0xff]
        %v423 = vld [vmem:[#allocation5 + $0x80] sm:$0xff]
        %v424 = vld [vmem:[#allocation5 + $0x88] sm:$0xff]
        %v425 = vld [vmem:[#allocation5 + $0x90] sm:$0xff]
        %v426 = vld [vmem:[#allocation5 + $0x98] sm:$0xff]
        %v427 = vld [vmem:[#allocation5 + $0xa0] sm:$0xff]
        %v428 = vld [vmem:[#allocation5 + $0xa8] sm:$0xff]
        %v429 = vld [vmem:[#allocation5 + $0xb0] sm:$0xff]
        %v430 = vld [vmem:[#allocation5 + $0xb8] sm:$0xff]
        %v431 = vld [vmem:[#allocation5 + $0xc0] sm:$0xff]
        %v432 = vld [vmem:[#allocation5 + $0xc8] sm:$0xff]
        %v433 = vld [vmem:[#allocation5 + $0xd0] sm:$0xff]
        %v434 = vld [vmem:[#allocation5 + $0xd8] sm:$0xff]
        %v435 = vld [vmem:[#allocation5 + $0xe0] sm:$0xff]
        %v436 = vld [vmem:[#allocation5 + $0xe8] sm:$0xff]
        %v437 = vld [vmem:[#allocation5 + $0xf0] sm:$0xff]
        %v438 = vld [vmem:[#allocation5 + $0xf8] sm:$0xff]
        %v439 = vld [vmem:[#allocation5 + $0x100] sm:$0xff]
        %v440 = vld [vmem:[#allocation5 + $0x108] sm:$0xff]
        %v441 = vld [vmem:[#allocation5 + $0x110] sm:$0xff]
        %v442 = vld [vmem:[#allocation5 + $0x118] sm:$0xff]
        %v443 = vld [vmem:[#allocation5 + $0x120] sm:$0xff]
        %v444 = vld [vmem:[#allocation5 + $0x128] sm:$0xff]
        %v445 = vld [vmem:[#allocation5 + $0x130] sm:$0xff]
        %v446 = vld [vmem:[#allocation5 + $0x138] sm:$0xff]
        %v447 = vld [vmem:[#allocation5 + $0x140] sm:$0xff]
        %v448 = vld [vmem:[#allocation5 + $0x148] sm:$0xff]
        %v449 = vld [vmem:[#allocation5 + $0x150] sm:$0xff]
        %v450 = vld [vmem:[#allocation5 + $0x158] sm:$0xff]
        %v451 = vld [vmem:[#allocation5 + $0x160] sm:$0xff]
        %v452 = vld [vmem:[#allocation5 + $0x168] sm:$0xff]
        %v453 = vld [vmem:[#allocation5 + $0x170] sm:$0xff]
        %v454 = vld [vmem:[#allocation5 + $0x178] sm:$0xff]
        %v455 = vld [vmem:[#allocation5 + $0x180] sm:$0xff]
        %v456 = vld [vmem:[#allocation5 + $0x188] sm:$0xff]
        %v457 = vld [vmem:[#allocation5 + $0x190] sm:$0xff]
        %v458 = vld [vmem:[#allocation5 + $0x198] sm:$0xff]
        %v459 = vld [vmem:[#allocation5 + $0x1a0] sm:$0xff]
        %v460 = vld [vmem:[#allocation5 + $0x1a8] sm:$0xff]
        %v461 = vld [vmem:[#allocation5 + $0x1b0] sm:$0xff]
        %v462 = vld [vmem:[#allocation5 + $0x1b8] sm:$0xff]
        %v463 = vld [vmem:[#allocation5 + $0x1c0] sm:$0xff]
        %v464 = vld [vmem:[#allocation5 + $0x1c8] sm:$0xff]
        %v465 = vld [vmem:[#allocation5 + $0x1d0] sm:$0xff]
        %v466 = vld [vmem:[#allocation5 + $0x1d8] sm:$0xff]
        %v467 = vld [vmem:[#allocation5 + $0x1e0] sm:$0xff]
        %v468 = vld [vmem:[#allocation5 + $0x1e8] sm:$0xff]
        %v469 = vld [vmem:[#allocation5 + $0x1f0] sm:$0xff]
        %v470 = vld [vmem:[#allocation5 + $0x1f8] sm:$0xff]
        %v471 = vld [vmem:[#allocation7] sm:$0xf]
        %v473 = vperm.slane %v471, 0
        %v474 = vperm.slane %v471, 1
        %v475 = vperm.slane %v471, 2
        %v476 = vperm.slane %v471, 3
        %v545 = vunpack.c.l.b16 %v407
        %v546 = vunpack.c.h.b16 %v407
        %v547 = vunpack.c.l.b16 %v408
        %v548 = vunpack.c.h.b16 %v408
        %v549 = vunpack.c.l.b16 %v409
        %v550 = vunpack.c.h.b16 %v409
        %v551 = vunpack.c.l.b16 %v410
        %v552 = vunpack.c.h.b16 %v410
        %v553 = vunpack.c.l.b16 %v411
        %v554 = vunpack.c.h.b16 %v411
        %v555 = vunpack.c.l.b16 %v412
        %v556 = vunpack.c.h.b16 %v412
        %v557 = vunpack.c.l.b16 %v413
        %v558 = vunpack.c.h.b16 %v413
        %v559 = vunpack.c.l.b16 %v414
        %v560 = vunpack.c.h.b16 %v414
        %v561 = vunpack.c.l.b16 %v415
        %v562 = vunpack.c.h.b16 %v415
        %v563 = vunpack.c.l.b16 %v416
        %v564 = vunpack.c.h.b16 %v416
        %v565 = vunpack.c.l.b16 %v417
        %v566 = vunpack.c.h.b16 %v417
        %v567 = vunpack.c.l.b16 %v418
        %v568 = vunpack.c.h.b16 %v418
        %v569 = vunpack.c.l.b16 %v419
        %v570 = vunpack.c.h.b16 %v419
        %v571 = vunpack.c.l.b16 %v420
        %v572 = vunpack.c.h.b16 %v420
        %v573 = vunpack.c.l.b16 %v421
        %v574 = vunpack.c.h.b16 %v421
        %v575 = vunpack.c.l.b16 %v422
        %v576 = vunpack.c.h.b16 %v422
        %v577 = vunpack.c.l.b16 %v423
        %v578 = vunpack.c.h.b16 %v423
        %v579 = vunpack.c.l.b16 %v424
        %v580 = vunpack.c.h.b16 %v424
        %v581 = vunpack.c.l.b16 %v425
        %v582 = vunpack.c.h.b16 %v425
        %v583 = vunpack.c.l.b16 %v426
        %v584 = vunpack.c.h.b16 %v426
        %v585 = vunpack.c.l.b16 %v427
        %v586 = vunpack.c.h.b16 %v427
        %v587 = vunpack.c.l.b16 %v428
        %v588 = vunpack.c.h.b16 %v428
        %v589 = vunpack.c.l.b16 %v429
        %v590 = vunpack.c.h.b16 %v429
        %v591 = vunpack.c.l.b16 %v430
        %v592 = vunpack.c.h.b16 %v430
        %v593 = vunpack.c.l.b16 %v431
        %v594 = vunpack.c.h.b16 %v431
        %v595 = vunpack.c.l.b16 %v432
        %v596 = vunpack.c.h.b16 %v432
        %v597 = vunpack.c.l.b16 %v433
        %v598 = vunpack.c.h.b16 %v433
        %v599 = vunpack.c.l.b16 %v434
        %v600 = vunpack.c.h.b16 %v434
        %v601 = vunpack.c.l.b16 %v435
        %v602 = vunpack.c.h.b16 %v435
        %v603 = vunpack.c.l.b16 %v436
        %v604 = vunpack.c.h.b16 %v436
        %v605 = vunpack.c.l.b16 %v437
        %v606 = vunpack.c.h.b16 %v437
        %v607 = vunpack.c.l.b16 %v438
        %v608 = vunpack.c.h.b16 %v438
        %v609 = vunpack.c.l.b16 %v439
        %v610 = vunpack.c.h.b16 %v439
        %v611 = vunpack.c.l.b16 %v440
        %v612 = vunpack.c.h.b16 %v440
        %v613 = vunpack.c.l.b16 %v441
        %v614 = vunpack.c.h.b16 %v441
        %v615 = vunpack.c.l.b16 %v442
        %v616 = vunpack.c.h.b16 %v442
        %v617 = vunpack.c.l.b16 %v443
        %v618 = vunpack.c.h.b16 %v443
        %v619 = vunpack.c.l.b16 %v444
        %v620 = vunpack.c.h.b16 %v444
        %v621 = vunpack.c.l.b16 %v445
        %v622 = vunpack.c.h.b16 %v445
        %v623 = vunpack.c.l.b16 %v446
        %v624 = vunpack.c.h.b16 %v446
        %v625 = vunpack.c.l.b16 %v447
        %v626 = vunpack.c.h.b16 %v447
        %v627 = vunpack.c.l.b16 %v448
        %v628 = vunpack.c.h.b16 %v448
        %v629 = vunpack.c.l.b16 %v449
        %v630 = vunpack.c.h.b16 %v449
        %v631 = vunpack.c.l.b16 %v450
        %v632 = vunpack.c.h.b16 %v450
        %v633 = vunpack.c.l.b16 %v451
        %v634 = vunpack.c.h.b16 %v451
        %v635 = vunpack.c.l.b16 %v452
        %v636 = vunpack.c.h.b16 %v452
        %v637 = vunpack.c.l.b16 %v453
        %v638 = vunpack.c.h.b16 %v453
        %v639 = vunpack.c.l.b16 %v454
        %v640 = vunpack.c.h.b16 %v454
        %v641 = vunpack.c.l.b16 %v455
        %v642 = vunpack.c.h.b16 %v455
        %v643 = vunpack.c.l.b16 %v456
        %v644 = vunpack.c.h.b16 %v456
        %v645 = vunpack.c.l.b16 %v457
        %v646 = vunpack.c.h.b16 %v457
        %v647 = vunpack.c.l.b16 %v458
        %v648 = vunpack.c.h.b16 %v458
        %v649 = vunpack.c.l.b16 %v459
        %v650 = vunpack.c.h.b16 %v459
        %v651 = vunpack.c.l.b16 %v460
        %v652 = vunpack.c.h.b16 %v460
        %v653 = vunpack.c.l.b16 %v461
        %v654 = vunpack.c.h.b16 %v461
        %v655 = vunpack.c.l.b16 %v462
        %v656 = vunpack.c.h.b16 %v462
        %v657 = vunpack.c.l.b16 %v463
        %v658 = vunpack.c.h.b16 %v463
        %v659 = vunpack.c.l.b16 %v464
        %v660 = vunpack.c.h.b16 %v464
        %v661 = vunpack.c.l.b16 %v465
        %v662 = vunpack.c.h.b16 %v465
        %v663 = vunpack.c.l.b16 %v466
        %v664 = vunpack.c.h.b16 %v466
        %v665 = vunpack.c.l.b16 %v467
        %v666 = vunpack.c.h.b16 %v467
        %v667 = vunpack.c.l.b16 %v468
        %v668 = vunpack.c.h.b16 %v468
        %v669 = vunpack.c.l.b16 %v469
        %v670 = vunpack.c.h.b16 %v469
        %v671 = vunpack.c.l.b16 %v470
        %v672 = vunpack.c.h.b16 %v470
        %v673 = vpack.c.b16 %v549, %v545
        %v674 = vpack.c.b16 %v550, %v546
        %v675 = vpack.c.b16 %v551, %v547
        %v676 = vpack.c.b16 %v552, %v548
        %v677 = vpack.c.b16 %v557, %v553
        %v678 = vpack.c.b16 %v558, %v554
        %v679 = vpack.c.b16 %v559, %v555
        %v680 = vpack.c.b16 %v560, %v556
        %v681 = vpack.c.b16 %v565, %v561
        %v682 = vpack.c.b16 %v566, %v562
        %v683 = vpack.c.b16 %v567, %v563
        %v684 = vpack.c.b16 %v568, %v564
        %v685 = vpack.c.b16 %v573, %v569
        %v686 = vpack.c.b16 %v574, %v570
        %v687 = vpack.c.b16 %v575, %v571
        %v688 = vpack.c.b16 %v576, %v572
        %v689 = vpack.c.b16 %v581, %v577
        %v690 = vpack.c.b16 %v582, %v578
        %v691 = vpack.c.b16 %v583, %v579
        %v692 = vpack.c.b16 %v584, %v580
        %v693 = vpack.c.b16 %v589, %v585
        %v694 = vpack.c.b16 %v590, %v586
        %v695 = vpack.c.b16 %v591, %v587
        %v696 = vpack.c.b16 %v592, %v588
        %v697 = vpack.c.b16 %v597, %v593
        %v698 = vpack.c.b16 %v598, %v594
        %v699 = vpack.c.b16 %v599, %v595
        %v700 = vpack.c.b16 %v600, %v596
        %v701 = vpack.c.b16 %v605, %v601
        %v702 = vpack.c.b16 %v606, %v602
        %v703 = vpack.c.b16 %v607, %v603
        %v704 = vpack.c.b16 %v608, %v604
        %v705 = vpack.c.b16 %v613, %v609
        %v706 = vpack.c.b16 %v614, %v610
        %v707 = vpack.c.b16 %v615, %v611
        %v708 = vpack.c.b16 %v616, %v612
        %v709 = vpack.c.b16 %v621, %v617
        %v710 = vpack.c.b16 %v622, %v618
        %v711 = vpack.c.b16 %v623, %v619
        %v712 = vpack.c.b16 %v624, %v620
        %v713 = vpack.c.b16 %v629, %v625
        %v714 = vpack.c.b16 %v630, %v626
        %v715 = vpack.c.b16 %v631, %v627
        %v716 = vpack.c.b16 %v632, %v628
        %v717 = vpack.c.b16 %v637, %v633
        %v718 = vpack.c.b16 %v638, %v634
        %v719 = vpack.c.b16 %v639, %v635
        %v720 = vpack.c.b16 %v640, %v636
        %v721 = vpack.c.b16 %v645, %v641
        %v722 = vpack.c.b16 %v646, %v642
        %v723 = vpack.c.b16 %v647, %v643
        %v724 = vpack.c.b16 %v648, %v644
        %v725 = vpack.c.b16 %v653, %v649
        %v726 = vpack.c.b16 %v654, %v650
        %v727 = vpack.c.b16 %v655, %v651
        %v728 = vpack.c.b16 %v656, %v652
        %v729 = vpack.c.b16 %v661, %v657
        %v730 = vpack.c.b16 %v662, %v658
        %v731 = vpack.c.b16 %v663, %v659
        %v732 = vpack.c.b16 %v664, %v660
        %v733 = vpack.c.b16 %v669, %v665
        %v734 = vpack.c.b16 %v670, %v666
        %v735 = vpack.c.b16 %v671, %v667
        %v736 = vpack.c.b16 %v672, %v668
        %801 = vmatpush.bf16.msra.mxu0 %v701
        %802 = vmatpush.bf16.msra.mxu0 %v697
        %803 = vmatpush.bf16.msra.mxu0 %v693
        %804 = vmatpush.bf16.msra.mxu0 %v689
        %805 = vmatpush.bf16.msra.mxu0 %v685
        %806 = vmatpush.bf16.msra.mxu0 %v681
        %807 = vmatpush.bf16.msra.mxu0 %v677
        %808 = vmatpush.bf16.msra.mxu0 %v673
        %809 = vmatmul.bf16.gmra.mxu0 %v393
        %v810 = vpop.f32.mrf.mxu0
        %v811 = vadd.f32 %v473, %v810
        %v812 = vpop.f32.mrf.mxu0
        %v813 = vadd.f32 %v473, %v812
        %814 = vmatmul.bf16.gmra.mxu0 %v395
        %v815 = vpop.f32.mrf.mxu0
        %v816 = vadd.f32 %v473, %v815
        %v817 = vpop.f32.mrf.mxu0
        %v818 = vadd.f32 %v473, %v817
        %819 = vmatmul.bf16.gmra.mxu0 %v397
        %v820 = vpop.f32.mrf.mxu0
        %v821 = vadd.f32 %v473, %v820
        %v822 = vpop.f32.mrf.mxu0
        %v823 = vadd.f32 %v473, %v822
        %824 = vmatmul.bf16.gmra.mxu0 %v399
        %v825 = vpop.f32.mrf.mxu0
        %v826 = vadd.f32 %v473, %v825
        %v827 = vpop.f32.mrf.mxu0
        %v828 = vadd.f32 %v473, %v827
        %829 = vmatmul.bf16.gmra.mxu0 %v401
        %v830 = vpop.f32.mrf.mxu0
        %v831 = vadd.f32 %v473, %v830
        %v832 = vpop.f32.mrf.mxu0
        %v833 = vadd.f32 %v473, %v832
        %834 = vmatmul.bf16.gmra.mxu0 %v403
        %v835 = vpop.f32.mrf.mxu0
        %v836 = vadd.f32 %v473, %v835
        %v837 = vpop.f32.mrf.mxu0
        %v838 = vadd.f32 %v473, %v837
        %839 = vmatmul.bf16.gmra.mxu0 %v405
        %v840 = vpop.f32.mrf.mxu0
        %v841 = vadd.f32 %v473, %v840
        %v842 = vpop.f32.mrf.mxu0
        %843 = vdwg.mxu0
        %844 = vmatpush.bf16.msra.mxu0 %v733
        %845 = vmatpush.bf16.msra.mxu0 %v729
        %846 = vmatpush.bf16.msra.mxu0 %v725
        %847 = vmatpush.bf16.msra.mxu0 %v721
        %848 = vmatpush.bf16.msra.mxu0 %v717
        %849 = vmatpush.bf16.msra.mxu0 %v713
        %850 = vmatpush.bf16.msra.mxu0 %v709
        %851 = vmatpush.bf16.msra.mxu0 %v705
        %852 = vmatmul.bf16.gmra.mxu0 %v394
        %v853 = vpop.f32.mrf.mxu0
        %v854 = vadd.f32 %v811, %v853
        %v855 = vpop.f32.mrf.mxu0
        %v856 = vadd.f32 %v813, %v855
        %857 = vmatmul.bf16.gmra.mxu0 %v396
        %v858 = vpop.f32.mrf.mxu0
        %v859 = vadd.f32 %v816, %v858
        %v860 = vpop.f32.mrf.mxu0
        %v861 = vadd.f32 %v818, %v860
        %862 = vmatmul.bf16.gmra.mxu0 %v398
        %v863 = vpop.f32.mrf.mxu0
        %v864 = vadd.f32 %v821, %v863
        %v865 = vpop.f32.mrf.mxu0
        %v866 = vadd.f32 %v823, %v865
        %867 = vmatmul.bf16.gmra.mxu0 %v400
        %v868 = vpop.f32.mrf.mxu0
        %v869 = vadd.f32 %v826, %v868
        %v870 = vpop.f32.mrf.mxu0
        %v871 = vadd.f32 %v828, %v870
        %872 = vmatmul.bf16.gmra.mxu0 %v402
        %v873 = vpop.f32.mrf.mxu0
        %v874 = vadd.f32 %v831, %v873
        %v875 = vpop.f32.mrf.mxu0
        %v876 = vadd.f32 %v833, %v875
        %877 = vmatmul.bf16.gmra.mxu0 %v404
        %v878 = vpop.f32.mrf.mxu0
        %v879 = vadd.f32 %v836, %v878
        %v880 = vpop.f32.mrf.mxu0
        %v881 = vadd.f32 %v838, %v880
        %882 = vmatmul.bf16.gmra.mxu0 %v406
        %v883 = vpop.f32.mrf.mxu0
        %v884 = vadd.f32 %v841, %v883
        %v885 = vpop.f32.mrf.mxu0
        %886 = vdwg.mxu0
        %887 = vmatpush.bf16.msra.mxu0 %v702
        %888 = vmatpush.bf16.msra.mxu0 %v698
        %889 = vmatpush.bf16.msra.mxu0 %v694
        %890 = vmatpush.bf16.msra.mxu0 %v690
        %891 = vmatpush.bf16.msra.mxu0 %v686
        %892 = vmatpush.bf16.msra.mxu0 %v682
        %893 = vmatpush.bf16.msra.mxu0 %v678
        %894 = vmatpush.bf16.msra.mxu0 %v674
        %895 = vmatmul.bf16.gmra.mxu0 %v393
        %v896 = vpop.f32.mrf.mxu0
        %v897 = vadd.f32 %v474, %v896
        %v898 = vpop.f32.mrf.mxu0
        %v899 = vadd.f32 %v474, %v898
        %900 = vmatmul.bf16.gmra.mxu0 %v395
        %v901 = vpop.f32.mrf.mxu0
        %v902 = vadd.f32 %v474, %v901
        %v903 = vpop.f32.mrf.mxu0
        %v904 = vadd.f32 %v474, %v903
        %905 = vmatmul.bf16.gmra.mxu0 %v397
        %v906 = vpop.f32.mrf.mxu0
        %v907 = vadd.f32 %v474, %v906
        %v908 = vpop.f32.mrf.mxu0
        %v909 = vadd.f32 %v474, %v908
        %910 = vmatmul.bf16.gmra.mxu0 %v399
        %v911 = vpop.f32.mrf.mxu0
        %v912 = vadd.f32 %v474, %v911
        %v913 = vpop.f32.mrf.mxu0
        %v914 = vadd.f32 %v474, %v913
        %915 = vmatmul.bf16.gmra.mxu0 %v401
        %v916 = vpop.f32.mrf.mxu0
        %v917 = vadd.f32 %v474, %v916
        %v918 = vpop.f32.mrf.mxu0
        %v919 = vadd.f32 %v474, %v918
        %920 = vmatmul.bf16.gmra.mxu0 %v403
        %v921 = vpop.f32.mrf.mxu0
        %v922 = vadd.f32 %v474, %v921
        %v923 = vpop.f32.mrf.mxu0
        %v924 = vadd.f32 %v474, %v923
        %925 = vmatmul.bf16.gmra.mxu0 %v405
        %v926 = vpop.f32.mrf.mxu0
        %v927 = vadd.f32 %v474, %v926
        %v928 = vpop.f32.mrf.mxu0
        %929 = vdwg.mxu0
        %930 = vmatpush.bf16.msra.mxu0 %v734
        %931 = vmatpush.bf16.msra.mxu0 %v730
        %932 = vmatpush.bf16.msra.mxu0 %v726
        %933 = vmatpush.bf16.msra.mxu0 %v722
        %934 = vmatpush.bf16.msra.mxu0 %v718
        %935 = vmatpush.bf16.msra.mxu0 %v714
        %936 = vmatpush.bf16.msra.mxu0 %v710
        %937 = vmatpush.bf16.msra.mxu0 %v706
        %938 = vmatmul.bf16.gmra.mxu0 %v394
        %v939 = vpop.f32.mrf.mxu0
        %v940 = vadd.f32 %v897, %v939
        %v941 = vpop.f32.mrf.mxu0
        %v942 = vadd.f32 %v899, %v941
        %943 = vmatmul.bf16.gmra.mxu0 %v396
        %v944 = vpop.f32.mrf.mxu0
        %v945 = vadd.f32 %v902, %v944
        %v946 = vpop.f32.mrf.mxu0
        %v947 = vadd.f32 %v904, %v946
        %948 = vmatmul.bf16.gmra.mxu0 %v398
        %v949 = vpop.f32.mrf.mxu0
        %v950 = vadd.f32 %v907, %v949
        %v951 = vpop.f32.mrf.mxu0
        %v952 = vadd.f32 %v909, %v951
        %953 = vmatmul.bf16.gmra.mxu0 %v400
        %v954 = vpop.f32.mrf.mxu0
        %v955 = vadd.f32 %v912, %v954
        %v956 = vpop.f32.mrf.mxu0
        %v957 = vadd.f32 %v914, %v956
        %958 = vmatmul.bf16.gmra.mxu0 %v402
        %v959 = vpop.f32.mrf.mxu0
        %v960 = vadd.f32 %v917, %v959
        %v961 = vpop.f32.mrf.mxu0
        %v962 = vadd.f32 %v919, %v961
        %963 = vmatmul.bf16.gmra.mxu0 %v404
        %v964 = vpop.f32.mrf.mxu0
        %v965 = vadd.f32 %v922, %v964
        %v966 = vpop.f32.mrf.mxu0
        %v967 = vadd.f32 %v924, %v966
        %968 = vmatmul.bf16.gmra.mxu0 %v406
        %v969 = vpop.f32.mrf.mxu0
        %v970 = vadd.f32 %v927, %v969
        %v971 = vpop.f32.mrf.mxu0
        %972 = vdwg.mxu0
        %973 = vmatpush.bf16.msra.mxu0 %v703
        %974 = vmatpush.bf16.msra.mxu0 %v699
        %975 = vmatpush.bf16.msra.mxu0 %v695
        %976 = vmatpush.bf16.msra.mxu0 %v691
        %977 = vmatpush.bf16.msra.mxu0 %v687
        %978 = vmatpush.bf16.msra.mxu0 %v683
        %979 = vmatpush.bf16.msra.mxu0 %v679
        %980 = vmatpush.bf16.msra.mxu0 %v675
        %981 = vmatmul.bf16.gmra.mxu0 %v393
        %v982 = vpop.f32.mrf.mxu0
        %v983 = vadd.f32 %v475, %v982
        %v984 = vpop.f32.mrf.mxu0
        %v985 = vadd.f32 %v475, %v984
        %986 = vmatmul.bf16.gmra.mxu0 %v395
        %v987 = vpop.f32.mrf.mxu0
        %v988 = vadd.f32 %v475, %v987
        %v989 = vpop.f32.mrf.mxu0
        %v990 = vadd.f32 %v475, %v989
        %991 = vmatmul.bf16.gmra.mxu0 %v397
        %v992 = vpop.f32.mrf.mxu0
        %v993 = vadd.f32 %v475, %v992
        %v994 = vpop.f32.mrf.mxu0
        %v995 = vadd.f32 %v475, %v994
        %996 = vmatmul.bf16.gmra.mxu0 %v399
        %v997 = vpop.f32.mrf.mxu0
        %v998 = vadd.f32 %v475, %v997
        %v999 = vpop.f32.mrf.mxu0
        %v1000 = vadd.f32 %v475, %v999
        %1001 = vmatmul.bf16.gmra.mxu0 %v401
        %v1002 = vpop.f32.mrf.mxu0
        %v1003 = vadd.f32 %v475, %v1002
        %v1004 = vpop.f32.mrf.mxu0
        %v1005 = vadd.f32 %v475, %v1004
        %1006 = vmatmul.bf16.gmra.mxu0 %v403
        %v1007 = vpop.f32.mrf.mxu0
        %v1008 = vadd.f32 %v475, %v1007
        %v1009 = vpop.f32.mrf.mxu0
        %v1010 = vadd.f32 %v475, %v1009
        %1011 = vmatmul.bf16.gmra.mxu0 %v405
        %v1012 = vpop.f32.mrf.mxu0
        %v1013 = vadd.f32 %v475, %v1012
        %v1014 = vpop.f32.mrf.mxu0
        %1015 = vdwg.mxu0
        %1016 = vmatpush.bf16.msra.mxu0 %v735
        %1017 = vmatpush.bf16.msra.mxu0 %v731
        %1018 = vmatpush.bf16.msra.mxu0 %v727
        %1019 = vmatpush.bf16.msra.mxu0 %v723
        %1020 = vmatpush.bf16.msra.mxu0 %v719
        %1021 = vmatpush.bf16.msra.mxu0 %v715
        %1022 = vmatpush.bf16.msra.mxu0 %v711
        %1023 = vmatpush.bf16.msra.mxu0 %v707
        %1024 = vmatmul.bf16.gmra.mxu0 %v394
        %v1025 = vpop.f32.mrf.mxu0
        %v1026 = vadd.f32 %v983, %v1025
        %v1027 = vpop.f32.mrf.mxu0
        %v1028 = vadd.f32 %v985, %v1027
        %1029 = vmatmul.bf16.gmra.mxu0 %v396
        %v1030 = vpop.f32.mrf.mxu0
        %v1031 = vadd.f32 %v988, %v1030
        %v1032 = vpop.f32.mrf.mxu0
        %v1033 = vadd.f32 %v990, %v1032
        %1034 = vmatmul.bf16.gmra.mxu0 %v398
        %v1035 = vpop.f32.mrf.mxu0
        %v1036 = vadd.f32 %v993, %v1035
        %v1037 = vpop.f32.mrf.mxu0
        %v1038 = vadd.f32 %v995, %v1037
        %1039 = vmatmul.bf16.gmra.mxu0 %v400
        %v1040 = vpop.f32.mrf.mxu0
        %v1041 = vadd.f32 %v998, %v1040
        %v1042 = vpop.f32.mrf.mxu0
        %v1043 = vadd.f32 %v1000, %v1042
        %1044 = vmatmul.bf16.gmra.mxu0 %v402
        %v1045 = vpop.f32.mrf.mxu0
        %v1046 = vadd.f32 %v1003, %v1045
        %v1047 = vpop.f32.mrf.mxu0
        %v1048 = vadd.f32 %v1005, %v1047
        %1049 = vmatmul.bf16.gmra.mxu0 %v404
        %v1050 = vpop.f32.mrf.mxu0
        %v1051 = vadd.f32 %v1008, %v1050
        %v1052 = vpop.f32.mrf.mxu0
        %v1053 = vadd.f32 %v1010, %v1052
        %1054 = vmatmul.bf16.gmra.mxu0 %v406
        %v1055 = vpop.f32.mrf.mxu0
        %v1056 = vadd.f32 %v1013, %v1055
        %v1057 = vpop.f32.mrf.mxu0
        %1058 = vdwg.mxu0
        %1059 = vmatpush.bf16.msra.mxu0 %v704
        %1060 = vmatpush.bf16.msra.mxu0 %v700
        %1061 = vmatpush.bf16.msra.mxu0 %v696
        %1062 = vmatpush.bf16.msra.mxu0 %v692
        %1063 = vmatpush.bf16.msra.mxu0 %v688
        %1064 = vmatpush.bf16.msra.mxu0 %v684
        %1065 = vmatpush.bf16.msra.mxu0 %v680
        %1066 = vmatpush.bf16.msra.mxu0 %v676
        %1067 = vmatmul.bf16.gmra.mxu0 %v393
        %v1068 = vpop.f32.mrf.mxu0
        %v1069 = vadd.f32 %v476, %v1068
        %v1070 = vpop.f32.mrf.mxu0
        %v1071 = vadd.f32 %v476, %v1070
        %1072 = vmatmul.bf16.gmra.mxu0 %v395
        %v1073 = vpop.f32.mrf.mxu0
        %v1074 = vadd.f32 %v476, %v1073
        %v1075 = vpop.f32.mrf.mxu0
        %v1076 = vadd.f32 %v476, %v1075
        %1077 = vmatmul.bf16.gmra.mxu0 %v397
        %v1078 = vpop.f32.mrf.mxu0
        %v1079 = vadd.f32 %v476, %v1078
        %v1080 = vpop.f32.mrf.mxu0
        %v1081 = vadd.f32 %v476, %v1080
        %1082 = vmatmul.bf16.gmra.mxu0 %v399
        %v1083 = vpop.f32.mrf.mxu0
        %v1084 = vadd.f32 %v476, %v1083
        %v1085 = vpop.f32.mrf.mxu0
        %v1086 = vadd.f32 %v476, %v1085
        %1087 = vmatmul.bf16.gmra.mxu0 %v401
        %v1088 = vpop.f32.mrf.mxu0
        %v1089 = vadd.f32 %v476, %v1088
        %v1090 = vpop.f32.mrf.mxu0
        %v1091 = vadd.f32 %v476, %v1090
        %1092 = vmatmul.bf16.gmra.mxu0 %v403
        %v1093 = vpop.f32.mrf.mxu0
        %v1094 = vadd.f32 %v476, %v1093
        %v1095 = vpop.f32.mrf.mxu0
        %v1096 = vadd.f32 %v476, %v1095
        %1097 = vmatmul.bf16.gmra.mxu0 %v405
        %v1098 = vpop.f32.mrf.mxu0
        %v1099 = vadd.f32 %v476, %v1098
        %v1100 = vpop.f32.mrf.mxu0
        %1101 = vdwg.mxu0
        %1102 = vmatpush.bf16.msra.mxu0 %v736
        %1103 = vmatpush.bf16.msra.mxu0 %v732
        %1104 = vmatpush.bf16.msra.mxu0 %v728
        %1105 = vmatpush.bf16.msra.mxu0 %v724
        %1106 = vmatpush.bf16.msra.mxu0 %v720
        %1107 = vmatpush.bf16.msra.mxu0 %v716
        %1108 = vmatpush.bf16.msra.mxu0 %v712
        %1109 = vmatpush.bf16.msra.mxu0 %v708
        %1110 = vmatmul.bf16.gmra.mxu0 %v394
        %v1111 = vpop.f32.mrf.mxu0
        %v1112 = vadd.f32 %v1069, %v1111
        %v1113 = vpop.f32.mrf.mxu0
        %v1114 = vadd.f32 %v1071, %v1113
        %1115 = vmatmul.bf16.gmra.mxu0 %v396
        %v1116 = vpop.f32.mrf.mxu0
        %v1117 = vadd.f32 %v1074, %v1116
        %v1118 = vpop.f32.mrf.mxu0
        %v1119 = vadd.f32 %v1076, %v1118
        %1120 = vmatmul.bf16.gmra.mxu0 %v398
        %v1121 = vpop.f32.mrf.mxu0
        %v1122 = vadd.f32 %v1079, %v1121
        %v1123 = vpop.f32.mrf.mxu0
        %v1124 = vadd.f32 %v1081, %v1123
        %1125 = vmatmul.bf16.gmra.mxu0 %v400
        %v1126 = vpop.f32.mrf.mxu0
        %v1127 = vadd.f32 %v1084, %v1126
        %v1128 = vpop.f32.mrf.mxu0
        %v1129 = vadd.f32 %v1086, %v1128
        %1130 = vmatmul.bf16.gmra.mxu0 %v402
        %v1131 = vpop.f32.mrf.mxu0
        %v1132 = vadd.f32 %v1089, %v1131
        %v1133 = vpop.f32.mrf.mxu0
        %v1134 = vadd.f32 %v1091, %v1133
        %1135 = vmatmul.bf16.gmra.mxu0 %v404
        %v1136 = vpop.f32.mrf.mxu0
        %v1137 = vadd.f32 %v1094, %v1136
        %v1138 = vpop.f32.mrf.mxu0
        %v1139 = vadd.f32 %v1096, %v1138
        %1140 = vmatmul.bf16.gmra.mxu0 %v406
        %v1141 = vpop.f32.mrf.mxu0
        %v1142 = vadd.f32 %v1099, %v1141
        %v1143 = vpop.f32.mrf.mxu0
        %1144 = vdwg.mxu0
        %v1145 = vmul.f32 %v854, 1.442695
        %v1146 = vpow.pop %v1145
        %v1147 = vmul.f32 %v940, 1.442695
        %v1148 = vpow.pop %v1147
        %v1149 = vmul.f32 %v856, 1.442695
        %v1150 = vpow.pop %v1149
        %v1151 = vmul.f32 %v942, 1.442695
        %v1152 = vpow.pop %v1151
        %v1153 = vmul.f32 %v859, 1.442695
        %v1154 = vpow.pop %v1153
        %v1155 = vmul.f32 %v945, 1.442695
        %v1156 = vpow.pop %v1155
        %v1157 = vmul.f32 %v861, 1.442695
        %v1158 = vpow.pop %v1157
        %v1159 = vmul.f32 %v947, 1.442695
        %v1160 = vpow.pop %v1159
        %v1161 = vmul.f32 %v864, 1.442695
        %v1162 = vpow.pop %v1161
        %v1163 = vmul.f32 %v950, 1.442695
        %v1164 = vpow.pop %v1163
        %v1165 = vmul.f32 %v866, 1.442695
        %v1166 = vpow.pop %v1165
        %v1167 = vmul.f32 %v952, 1.442695
        %v1168 = vpow.pop %v1167
        %v1169 = vmul.f32 %v869, 1.442695
        %v1170 = vpow.pop %v1169
        %v1171 = vmul.f32 %v955, 1.442695
        %v1172 = vpow.pop %v1171
        %v1173 = vmul.f32 %v871, 1.442695
        %v1174 = vpow.pop %v1173
        %v1175 = vmul.f32 %v957, 1.442695
        %v1176 = vpow.pop %v1175
        %v1177 = vmul.f32 %v874, 1.442695
        %v1178 = vpow.pop %v1177
        %v1179 = vmul.f32 %v960, 1.442695
        %v1180 = vpow.pop %v1179
        %v1181 = vmul.f32 %v876, 1.442695
        %v1182 = vpow.pop %v1181
        %v1183 = vmul.f32 %v962, 1.442695
        %v1184 = vpow.pop %v1183
        %v1185 = vmul.f32 %v879, 1.442695
        %v1186 = vpow.pop %v1185
        %v1187 = vmul.f32 %v965, 1.442695
        %v1188 = vpow.pop %v1187
        %v1189 = vmul.f32 %v881, 1.442695
        %v1190 = vpow.pop %v1189
        %v1191 = vmul.f32 %v967, 1.442695
        %v1192 = vpow.pop %v1191
        %v1193 = vmul.f32 %v884, 1.442695
        %v1194 = vpow.pop %v1193
        %v1195 = vmul.f32 %v970, 1.442695
        %v1196 = vpow.pop %v1195
        %v1197 = vmul.f32 %v367, %v1146
        %v1198 = vmul.f32 %v368, %v1148
        %v1199 = vmul.f32 %v369, %v1150
        %v1200 = vmul.f32 %v370, %v1152
        %v1201 = vmul.f32 %v371, %v1154
        %v1202 = vmul.f32 %v372, %v1156
        %v1203 = vmul.f32 %v373, %v1158
        %v1204 = vmul.f32 %v374, %v1160
        %v1205 = vmul.f32 %v375, %v1162
        %v1206 = vmul.f32 %v376, %v1164
        %v1207 = vmul.f32 %v377, %v1166
        %v1208 = vmul.f32 %v378, %v1168
        %v1209 = vmul.f32 %v379, %v1170
        %v1210 = vmul.f32 %v380, %v1172
        %v1211 = vmul.f32 %v381, %v1174
        %v1212 = vmul.f32 %v382, %v1176
        %v1213 = vmul.f32 %v383, %v1178
        %v1214 = vmul.f32 %v384, %v1180
        %v1215 = vmul.f32 %v385, %v1182
        %v1216 = vmul.f32 %v386, %v1184
        %v1217 = vmul.f32 %v387, %v1186
        %v1218 = vmul.f32 %v388, %v1188
        %v1219 = vmul.f32 %v389, %v1190
        %v1220 = vmul.f32 %v390, %v1192
        %v1221 = vmul.f32 %v391, %v1194
        %v1222 = vmul.f32 %v392, %v1196
        %v1223 = vadd.f32 %v1197, %v1026
        %v1224 = vadd.f32 %v1198, %v1112
        %v1225 = vadd.f32 %v1199, %v1028
        %v1226 = vadd.f32 %v1200, %v1114
        %v1227 = vadd.f32 %v1201, %v1031
        %v1228 = vadd.f32 %v1202, %v1117
        %v1229 = vadd.f32 %v1203, %v1033
        %v1230 = vadd.f32 %v1204, %v1119
        %v1231 = vadd.f32 %v1205, %v1036
        %v1232 = vadd.f32 %v1206, %v1122
        %v1233 = vadd.f32 %v1207, %v1038
        %v1234 = vadd.f32 %v1208, %v1124
        %v1235 = vadd.f32 %v1209, %v1041
        %v1236 = vadd.f32 %v1210, %v1127
        %v1237 = vadd.f32 %v1211, %v1043
        %v1238 = vadd.f32 %v1212, %v1129
        %v1239 = vadd.f32 %v1213, %v1046
        %v1240 = vadd.f32 %v1214, %v1132
        %v1241 = vadd.f32 %v1215, %v1048
        %v1242 = vadd.f32 %v1216, %v1134
        %v1243 = vadd.f32 %v1217, %v1051
        %v1244 = vadd.f32 %v1218, %v1137
        %v1245 = vadd.f32 %v1219, %v1053
        %v1246 = vadd.f32 %v1220, %v1139
        %v1247 = vadd.f32 %v1221, %v1056
        %v1248 = vadd.f32 %v1222, %v1142
        %v1249 = vpack.c.bf16 %v1225, %v1223
        %v1250 = vpack.c.bf16 %v1226, %v1224
        %v1251 = vpack.c.bf16 %v1229, %v1227
        %v1252 = vpack.c.bf16 %v1230, %v1228
        %v1253 = vpack.c.bf16 %v1233, %v1231
        %v1254 = vpack.c.bf16 %v1234, %v1232
        %v1255 = vpack.c.bf16 %v1237, %v1235
        %v1256 = vpack.c.bf16 %v1238, %v1236
        %v1257 = vpack.c.bf16 %v1241, %v1239
        %v1258 = vpack.c.bf16 %v1242, %v1240
        %v1259 = vpack.c.bf16 %v1245, %v1243
        %v1260 = vpack.c.bf16 %v1246, %v1244
        %v1261 = vpack.c.bf16 %v1247, %v1247
        %v1262 = vpack.c.bf16 %v1248, %v1248
        %v1263 = vld [vmem:[#allocation8] sm:$0xff]
        %v1264 = vld [vmem:[#allocation8 + $0x8] sm:$0xff]
        %v1265 = vld [vmem:[#allocation8 + $0x10] sm:$0xff]
        %v1266 = vld [vmem:[#allocation8 + $0x18] sm:$0xff]
        %v1267 = vld [vmem:[#allocation8 + $0x20] sm:$0xff]
        %v1268 = vld [vmem:[#allocation8 + $0x28] sm:$0xff]
        %v1269 = vld [vmem:[#allocation8 + $0x30] sm:$0xff]
        %v1270 = vld [vmem:[#allocation8 + $0x38] sm:$0xff]
        %v1271 = vld [vmem:[#allocation8 + $0x40] sm:$0xff]
        %v1272 = vld [vmem:[#allocation8 + $0x48] sm:$0xff]
        %v1273 = vld [vmem:[#allocation8 + $0x50] sm:$0xff]
        %v1274 = vld [vmem:[#allocation8 + $0x58] sm:$0xff]
        %v1275 = vld [vmem:[#allocation8 + $0x60] sm:$0xff]
        %v1276 = vld [vmem:[#allocation8 + $0x68] sm:$0xff]
        %v1277 = vld [vmem:[#allocation8 + $0x70] sm:$0xff]
        %v1278 = vld [vmem:[#allocation8 + $0x78] sm:$0xff]
        %v1279 = vld [vmem:[#allocation8 + $0x80] sm:$0xff]
        %v1280 = vld [vmem:[#allocation8 + $0x88] sm:$0xff]
        %v1281 = vld [vmem:[#allocation8 + $0x90] sm:$0xff]
        %v1282 = vld [vmem:[#allocation8 + $0x98] sm:$0xff]
        %v1283 = vld [vmem:[#allocation8 + $0xa0] sm:$0xff]
        %v1284 = vld [vmem:[#allocation8 + $0xa8] sm:$0xff]
        %v1285 = vld [vmem:[#allocation8 + $0xb0] sm:$0xff]
        %v1286 = vld [vmem:[#allocation8 + $0xb8] sm:$0xff]
        %v1287 = vld [vmem:[#allocation8 + $0xc0] sm:$0xff]
        %v1288 = vld [vmem:[#allocation8 + $0xc8] sm:$0xff]
        %v1289 = vld [vmem:[#allocation8 + $0xd0] sm:$0xff]
        %v1290 = vld [vmem:[#allocation8 + $0xd8] sm:$0xff]
        %v1291 = vld [vmem:[#allocation8 + $0xe0] sm:$0xff]
        %v1292 = vld [vmem:[#allocation8 + $0xe8] sm:$0xff]
        %v1293 = vld [vmem:[#allocation8 + $0xf0] sm:$0xff]
        %v1294 = vld [vmem:[#allocation8 + $0xf8] sm:$0xff]
        %v1295 = vld [vmem:[#allocation8 + $0x100] sm:$0xff]
        %v1296 = vld [vmem:[#allocation8 + $0x108] sm:$0xff]
        %v1297 = vld [vmem:[#allocation8 + $0x110] sm:$0xff]
        %v1298 = vld [vmem:[#allocation8 + $0x118] sm:$0xff]
        %v1299 = vld [vmem:[#allocation8 + $0x120] sm:$0xff]
        %v1300 = vld [vmem:[#allocation8 + $0x128] sm:$0xff]
        %v1301 = vld [vmem:[#allocation8 + $0x130] sm:$0xff]
        %v1302 = vld [vmem:[#allocation8 + $0x138] sm:$0xff]
        %v1303 = vld [vmem:[#allocation8 + $0x140] sm:$0xff]
        %v1304 = vld [vmem:[#allocation8 + $0x148] sm:$0xff]
        %v1305 = vld [vmem:[#allocation8 + $0x150] sm:$0xff]
        %v1306 = vld [vmem:[#allocation8 + $0x158] sm:$0xff]
        %v1307 = vld [vmem:[#allocation8 + $0x160] sm:$0xff]
        %v1308 = vld [vmem:[#allocation8 + $0x168] sm:$0xff]
        %v1309 = vld [vmem:[#allocation8 + $0x170] sm:$0xff]
        %v1310 = vld [vmem:[#allocation8 + $0x178] sm:$0xff]
        %v1311 = vld [vmem:[#allocation8 + $0x180] sm:$0xff]
        %v1312 = vld [vmem:[#allocation8 + $0x188] sm:$0xff]
        %v1313 = vld [vmem:[#allocation8 + $0x190] sm:$0xff]
        %v1314 = vld [vmem:[#allocation8 + $0x198] sm:$0xff]
        %v1315 = vld [vmem:[#allocation8 + $0x1a0] sm:$0xff]
        %v1316 = vld [vmem:[#allocation8 + $0x1a8] sm:$0xff]
        %v1317 = vld [vmem:[#allocation8 + $0x1b0] sm:$0xff]
        %v1318 = vld [vmem:[#allocation8 + $0x1b8] sm:$0xff]
        %v1319 = vld [vmem:[#allocation8 + $0x1c0] sm:$0xff]
        %v1320 = vld [vmem:[#allocation8 + $0x1c8] sm:$0xff]
        %v1321 = vld [vmem:[#allocation8 + $0x1d0] sm:$0xff]
        %v1322 = vld [vmem:[#allocation8 + $0x1d8] sm:$0xff]
        %v1323 = vld [vmem:[#allocation8 + $0x1e0] sm:$0xff]
        %v1324 = vld [vmem:[#allocation8 + $0x1e8] sm:$0xff]
        %v1325 = vld [vmem:[#allocation8 + $0x1f0] sm:$0xff]
        %v1326 = vld [vmem:[#allocation8 + $0x1f8] sm:$0xff]
        %v1327 = vld [vmem:[#allocation10] sm:$0xf]
        %v1329 = vperm.slane %v1327, 0
        %v1330 = vperm.slane %v1327, 1
        %v1331 = vperm.slane %v1327, 2
        %v1332 = vperm.slane %v1327, 3
        %v1401 = vunpack.c.l.b16 %v1263
        %v1402 = vunpack.c.h.b16 %v1263
        %v1403 = vunpack.c.l.b16 %v1264
        %v1404 = vunpack.c.h.b16 %v1264
        %v1405 = vunpack.c.l.b16 %v1265
        %v1406 = vunpack.c.h.b16 %v1265
        %v1407 = vunpack.c.l.b16 %v1266
        %v1408 = vunpack.c.h.b16 %v1266
        %v1409 = vunpack.c.l.b16 %v1267
        %v1410 = vunpack.c.h.b16 %v1267
        %v1411 = vunpack.c.l.b16 %v1268
        %v1412 = vunpack.c.h.b16 %v1268
        %v1413 = vunpack.c.l.b16 %v1269
        %v1414 = vunpack.c.h.b16 %v1269
        %v1415 = vunpack.c.l.b16 %v1270
        %v1416 = vunpack.c.h.b16 %v1270
        %v1417 = vunpack.c.l.b16 %v1271
        %v1418 = vunpack.c.h.b16 %v1271
        %v1419 = vunpack.c.l.b16 %v1272
        %v1420 = vunpack.c.h.b16 %v1272
        %v1421 = vunpack.c.l.b16 %v1273
        %v1422 = vunpack.c.h.b16 %v1273
        %v1423 = vunpack.c.l.b16 %v1274
        %v1424 = vunpack.c.h.b16 %v1274
        %v1425 = vunpack.c.l.b16 %v1275
        %v1426 = vunpack.c.h.b16 %v1275
        %v1427 = vunpack.c.l.b16 %v1276
        %v1428 = vunpack.c.h.b16 %v1276
        %v1429 = vunpack.c.l.b16 %v1277
        %v1430 = vunpack.c.h.b16 %v1277
        %v1431 = vunpack.c.l.b16 %v1278
        %v1432 = vunpack.c.h.b16 %v1278
        %v1433 = vunpack.c.l.b16 %v1279
        %v1434 = vunpack.c.h.b16 %v1279
        %v1435 = vunpack.c.l.b16 %v1280
        %v1436 = vunpack.c.h.b16 %v1280
        %v1437 = vunpack.c.l.b16 %v1281
        %v1438 = vunpack.c.h.b16 %v1281
        %v1439 = vunpack.c.l.b16 %v1282
        %v1440 = vunpack.c.h.b16 %v1282
        %v1441 = vunpack.c.l.b16 %v1283
        %v1442 = vunpack.c.h.b16 %v1283
        %v1443 = vunpack.c.l.b16 %v1284
        %v1444 = vunpack.c.h.b16 %v1284
        %v1445 = vunpack.c.l.b16 %v1285
        %v1446 = vunpack.c.h.b16 %v1285
        %v1447 = vunpack.c.l.b16 %v1286
        %v1448 = vunpack.c.h.b16 %v1286
        %v1449 = vunpack.c.l.b16 %v1287
        %v1450 = vunpack.c.h.b16 %v1287
        %v1451 = vunpack.c.l.b16 %v1288
        %v1452 = vunpack.c.h.b16 %v1288
        %v1453 = vunpack.c.l.b16 %v1289
        %v1454 = vunpack.c.h.b16 %v1289
        %v1455 = vunpack.c.l.b16 %v1290
        %v1456 = vunpack.c.h.b16 %v1290
        %v1457 = vunpack.c.l.b16 %v1291
        %v1458 = vunpack.c.h.b16 %v1291
        %v1459 = vunpack.c.l.b16 %v1292
        %v1460 = vunpack.c.h.b16 %v1292
        %v1461 = vunpack.c.l.b16 %v1293
        %v1462 = vunpack.c.h.b16 %v1293
        %v1463 = vunpack.c.l.b16 %v1294
        %v1464 = vunpack.c.h.b16 %v1294
        %v1465 = vunpack.c.l.b16 %v1295
        %v1466 = vunpack.c.h.b16 %v1295
        %v1467 = vunpack.c.l.b16 %v1296
        %v1468 = vunpack.c.h.b16 %v1296
        %v1469 = vunpack.c.l.b16 %v1297
        %v1470 = vunpack.c.h.b16 %v1297
        %v1471 = vunpack.c.l.b16 %v1298
        %v1472 = vunpack.c.h.b16 %v1298
        %v1473 = vunpack.c.l.b16 %v1299
        %v1474 = vunpack.c.h.b16 %v1299
        %v1475 = vunpack.c.l.b16 %v1300
        %v1476 = vunpack.c.h.b16 %v1300
        %v1477 = vunpack.c.l.b16 %v1301
        %v1478 = vunpack.c.h.b16 %v1301
        %v1479 = vunpack.c.l.b16 %v1302
        %v1480 = vunpack.c.h.b16 %v1302
        %v1481 = vunpack.c.l.b16 %v1303
        %v1482 = vunpack.c.h.b16 %v1303
        %v1483 = vunpack.c.l.b16 %v1304
        %v1484 = vunpack.c.h.b16 %v1304
        %v1485 = vunpack.c.l.b16 %v1305
        %v1486 = vunpack.c.h.b16 %v1305
        %v1487 = vunpack.c.l.b16 %v1306
        %v1488 = vunpack.c.h.b16 %v1306
        %v1489 = vunpack.c.l.b16 %v1307
        %v1490 = vunpack.c.h.b16 %v1307
        %v1491 = vunpack.c.l.b16 %v1308
        %v1492 = vunpack.c.h.b16 %v1308
        %v1493 = vunpack.c.l.b16 %v1309
        %v1494 = vunpack.c.h.b16 %v1309
        %v1495 = vunpack.c.l.b16 %v1310
        %v1496 = vunpack.c.h.b16 %v1310
        %v1497 = vunpack.c.l.b16 %v1311
        %v1498 = vunpack.c.h.b16 %v1311
        %v1499 = vunpack.c.l.b16 %v1312
        %v1500 = vunpack.c.h.b16 %v1312
        %v1501 = vunpack.c.l.b16 %v1313
        %v1502 = vunpack.c.h.b16 %v1313
        %v1503 = vunpack.c.l.b16 %v1314
        %v1504 = vunpack.c.h.b16 %v1314
        %v1505 = vunpack.c.l.b16 %v1315
        %v1506 = vunpack.c.h.b16 %v1315
        %v1507 = vunpack.c.l.b16 %v1316
        %v1508 = vunpack.c.h.b16 %v1316
        %v1509 = vunpack.c.l.b16 %v1317
        %v1510 = vunpack.c.h.b16 %v1317
        %v1511 = vunpack.c.l.b16 %v1318
        %v1512 = vunpack.c.h.b16 %v1318
        %v1513 = vunpack.c.l.b16 %v1319
        %v1514 = vunpack.c.h.b16 %v1319
        %v1515 = vunpack.c.l.b16 %v1320
        %v1516 = vunpack.c.h.b16 %v1320
        %v1517 = vunpack.c.l.b16 %v1321
        %v1518 = vunpack.c.h.b16 %v1321
        %v1519 = vunpack.c.l.b16 %v1322
        %v1520 = vunpack.c.h.b16 %v1322
        %v1521 = vunpack.c.l.b16 %v1323
        %v1522 = vunpack.c.h.b16 %v1323
        %v1523 = vunpack.c.l.b16 %v1324
        %v1524 = vunpack.c.h.b16 %v1324
        %v1525 = vunpack.c.l.b16 %v1325
        %v1526 = vunpack.c.h.b16 %v1325
        %v1527 = vunpack.c.l.b16 %v1326
        %v1528 = vunpack.c.h.b16 %v1326
        %v1529 = vpack.c.b16 %v1405, %v1401
        %v1530 = vpack.c.b16 %v1406, %v1402
        %v1531 = vpack.c.b16 %v1407, %v1403
        %v1532 = vpack.c.b16 %v1408, %v1404
        %v1533 = vpack.c.b16 %v1413, %v1409
        %v1534 = vpack.c.b16 %v1414, %v1410
        %v1535 = vpack.c.b16 %v1415, %v1411
        %v1536 = vpack.c.b16 %v1416, %v1412
        %v1537 = vpack.c.b16 %v1421, %v1417
        %v1538 = vpack.c.b16 %v1422, %v1418
        %v1539 = vpack.c.b16 %v1423, %v1419
        %v1540 = vpack.c.b16 %v1424, %v1420
        %v1541 = vpack.c.b16 %v1429, %v1425
        %v1542 = vpack.c.b16 %v1430, %v1426
        %v1543 = vpack.c.b16 %v1431, %v1427
        %v1544 = vpack.c.b16 %v1432, %v1428
        %v1545 = vpack.c.b16 %v1437, %v1433
        %v1546 = vpack.c.b16 %v1438, %v1434
        %v1547 = vpack.c.b16 %v1439, %v1435
        %v1548 = vpack.c.b16 %v1440, %v1436
        %v1549 = vpack.c.b16 %v1445, %v1441
        %v1550 = vpack.c.b16 %v1446, %v1442
        %v1551 = vpack.c.b16 %v1447, %v1443
        %v1552 = vpack.c.b16 %v1448, %v1444
        %v1553 = vpack.c.b16 %v1453, %v1449
        %v1554 = vpack.c.b16 %v1454, %v1450
        %v1555 = vpack.c.b16 %v1455, %v1451
        %v1556 = vpack.c.b16 %v1456, %v1452
        %v1557 = vpack.c.b16 %v1461, %v1457
        %v1558 = vpack.c.b16 %v1462, %v1458
        %v1559 = vpack.c.b16 %v1463, %v1459
        %v1560 = vpack.c.b16 %v1464, %v1460
        %v1561 = vpack.c.b16 %v1469, %v1465
        %v1562 = vpack.c.b16 %v1470, %v1466
        %v1563 = vpack.c.b16 %v1471, %v1467
        %v1564 = vpack.c.b16 %v1472, %v1468
        %v1565 = vpack.c.b16 %v1477, %v1473
        %v1566 = vpack.c.b16 %v1478, %v1474
        %v1567 = vpack.c.b16 %v1479, %v1475
        %v1568 = vpack.c.b16 %v1480, %v1476
        %v1569 = vpack.c.b16 %v1485, %v1481
        %v1570 = vpack.c.b16 %v1486, %v1482
        %v1571 = vpack.c.b16 %v1487, %v1483
        %v1572 = vpack.c.b16 %v1488, %v1484
        %v1573 = vpack.c.b16 %v1493, %v1489
        %v1574 = vpack.c.b16 %v1494, %v1490
        %v1575 = vpack.c.b16 %v1495, %v1491
        %v1576 = vpack.c.b16 %v1496, %v1492
        %v1577 = vpack.c.b16 %v1501, %v1497
        %v1578 = vpack.c.b16 %v1502, %v1498
        %v1579 = vpack.c.b16 %v1503, %v1499
        %v1580 = vpack.c.b16 %v1504, %v1500
        %v1581 = vpack.c.b16 %v1509, %v1505
        %v1582 = vpack.c.b16 %v1510, %v1506
        %v1583 = vpack.c.b16 %v1511, %v1507
        %v1584 = vpack.c.b16 %v1512, %v1508
        %v1585 = vpack.c.b16 %v1517, %v1513
        %v1586 = vpack.c.b16 %v1518, %v1514
        %v1587 = vpack.c.b16 %v1519, %v1515
        %v1588 = vpack.c.b16 %v1520, %v1516
        %v1589 = vpack.c.b16 %v1525, %v1521
        %v1590 = vpack.c.b16 %v1526, %v1522
        %v1591 = vpack.c.b16 %v1527, %v1523
        %v1592 = vpack.c.b16 %v1528, %v1524
        %1657 = vmatpush.bf16.msra.mxu0 %v1557
        %1658 = vmatpush.bf16.msra.mxu0 %v1553
        %1659 = vmatpush.bf16.msra.mxu0 %v1549
        %1660 = vmatpush.bf16.msra.mxu0 %v1545
        %1661 = vmatpush.bf16.msra.mxu0 %v1541
        %1662 = vmatpush.bf16.msra.mxu0 %v1537
        %1663 = vmatpush.bf16.msra.mxu0 %v1533
        %1664 = vmatpush.bf16.msra.mxu0 %v1529
        %1665 = vmatmul.bf16.gmra.mxu0 %v1249
        %v1666 = vpop.f32.mrf.mxu0
        %v1667 = vadd.f32 %v1329, %v1666
        %v1668 = vpop.f32.mrf.mxu0
        %v1669 = vadd.f32 %v1329, %v1668
        %1670 = vmatmul.bf16.gmra.mxu0 %v1251
        %v1671 = vpop.f32.mrf.mxu0
        %v1672 = vadd.f32 %v1329, %v1671
        %v1673 = vpop.f32.mrf.mxu0
        %v1674 = vadd.f32 %v1329, %v1673
        %1675 = vmatmul.bf16.gmra.mxu0 %v1253
        %v1676 = vpop.f32.mrf.mxu0
        %v1677 = vadd.f32 %v1329, %v1676
        %v1678 = vpop.f32.mrf.mxu0
        %v1679 = vadd.f32 %v1329, %v1678
        %1680 = vmatmul.bf16.gmra.mxu0 %v1255
        %v1681 = vpop.f32.mrf.mxu0
        %v1682 = vadd.f32 %v1329, %v1681
        %v1683 = vpop.f32.mrf.mxu0
        %v1684 = vadd.f32 %v1329, %v1683
        %1685 = vmatmul.bf16.gmra.mxu0 %v1257
        %v1686 = vpop.f32.mrf.mxu0
        %v1687 = vadd.f32 %v1329, %v1686
        %v1688 = vpop.f32.mrf.mxu0
        %v1689 = vadd.f32 %v1329, %v1688
        %1690 = vmatmul.bf16.gmra.mxu0 %v1259
        %v1691 = vpop.f32.mrf.mxu0
        %v1692 = vadd.f32 %v1329, %v1691
        %v1693 = vpop.f32.mrf.mxu0
        %v1694 = vadd.f32 %v1329, %v1693
        %1695 = vmatmul.bf16.gmra.mxu0 %v1261
        %v1696 = vpop.f32.mrf.mxu0
        %v1697 = vadd.f32 %v1329, %v1696
        %v1698 = vpop.f32.mrf.mxu0
        %1699 = vdwg.mxu0
        %1700 = vmatpush.bf16.msra.mxu0 %v1589
        %1701 = vmatpush.bf16.msra.mxu0 %v1585
        %1702 = vmatpush.bf16.msra.mxu0 %v1581
        %1703 = vmatpush.bf16.msra.mxu0 %v1577
        %1704 = vmatpush.bf16.msra.mxu0 %v1573
        %1705 = vmatpush.bf16.msra.mxu0 %v1569
        %1706 = vmatpush.bf16.msra.mxu0 %v1565
        %1707 = vmatpush.bf16.msra.mxu0 %v1561
        %1708 = vmatmul.bf16.gmra.mxu0 %v1250
        %v1709 = vpop.f32.mrf.mxu0
        %v1710 = vadd.f32 %v1667, %v1709
        %v1711 = vpop.f32.mrf.mxu0
        %v1712 = vadd.f32 %v1669, %v1711
        %1713 = vmatmul.bf16.gmra.mxu0 %v1252
        %v1714 = vpop.f32.mrf.mxu0
        %v1715 = vadd.f32 %v1672, %v1714
        %v1716 = vpop.f32.mrf.mxu0
        %v1717 = vadd.f32 %v1674, %v1716
        %1718 = vmatmul.bf16.gmra.mxu0 %v1254
        %v1719 = vpop.f32.mrf.mxu0
        %v1720 = vadd.f32 %v1677, %v1719
        %v1721 = vpop.f32.mrf.mxu0
        %v1722 = vadd.f32 %v1679, %v1721
        %1723 = vmatmul.bf16.gmra.mxu0 %v1256
        %v1724 = vpop.f32.mrf.mxu0
        %v1725 = vadd.f32 %v1682, %v1724
        %v1726 = vpop.f32.mrf.mxu0
        %v1727 = vadd.f32 %v1684, %v1726
        %1728 = vmatmul.bf16.gmra.mxu0 %v1258
        %v1729 = vpop.f32.mrf.mxu0
        %v1730 = vadd.f32 %v1687, %v1729
        %v1731 = vpop.f32.mrf.mxu0
        %v1732 = vadd.f32 %v1689, %v1731
        %1733 = vmatmul.bf16.gmra.mxu0 %v1260
        %v1734 = vpop.f32.mrf.mxu0
        %v1735 = vadd.f32 %v1692, %v1734
        %v1736 = vpop.f32.mrf.mxu0
        %v1737 = vadd.f32 %v1694, %v1736
        %1738 = vmatmul.bf16.gmra.mxu0 %v1262
        %v1739 = vpop.f32.mrf.mxu0
        %v1740 = vadd.f32 %v1697, %v1739
        %v1741 = vpop.f32.mrf.mxu0
        %1742 = vdwg.mxu0
        %1743 = vmatpush.bf16.msra.mxu0 %v1558
        %1744 = vmatpush.bf16.msra.mxu0 %v1554
        %1745 = vmatpush.bf16.msra.mxu0 %v1550
        %1746 = vmatpush.bf16.msra.mxu0 %v1546
        %1747 = vmatpush.bf16.msra.mxu0 %v1542
        %1748 = vmatpush.bf16.msra.mxu0 %v1538
        %1749 = vmatpush.bf16.msra.mxu0 %v1534
        %1750 = vmatpush.bf16.msra.mxu0 %v1530
        %1751 = vmatmul.bf16.gmra.mxu0 %v1249
        %v1752 = vpop.f32.mrf.mxu0
        %v1753 = vadd.f32 %v1330, %v1752
        %v1754 = vpop.f32.mrf.mxu0
        %v1755 = vadd.f32 %v1330, %v1754
        %1756 = vmatmul.bf16.gmra.mxu0 %v1251
        %v1757 = vpop.f32.mrf.mxu0
        %v1758 = vadd.f32 %v1330, %v1757
        %v1759 = vpop.f32.mrf.mxu0
        %v1760 = vadd.f32 %v1330, %v1759
        %1761 = vmatmul.bf16.gmra.mxu0 %v1253
        %v1762 = vpop.f32.mrf.mxu0
        %v1763 = vadd.f32 %v1330, %v1762
        %v1764 = vpop.f32.mrf.mxu0
        %v1765 = vadd.f32 %v1330, %v1764
        %1766 = vmatmul.bf16.gmra.mxu0 %v1255
        %v1767 = vpop.f32.mrf.mxu0
        %v1768 = vadd.f32 %v1330, %v1767
        %v1769 = vpop.f32.mrf.mxu0
        %v1770 = vadd.f32 %v1330, %v1769
        %1771 = vmatmul.bf16.gmra.mxu0 %v1257
        %v1772 = vpop.f32.mrf.mxu0
        %v1773 = vadd.f32 %v1330, %v1772
        %v1774 = vpop.f32.mrf.mxu0
        %v1775 = vadd.f32 %v1330, %v1774
        %1776 = vmatmul.bf16.gmra.mxu0 %v1259
        %v1777 = vpop.f32.mrf.mxu0
        %v1778 = vadd.f32 %v1330, %v1777
        %v1779 = vpop.f32.mrf.mxu0
        %v1780 = vadd.f32 %v1330, %v1779
        %1781 = vmatmul.bf16.gmra.mxu0 %v1261
        %v1782 = vpop.f32.mrf.mxu0
        %v1783 = vadd.f32 %v1330, %v1782
        %v1784 = vpop.f32.mrf.mxu0
        %1785 = vdwg.mxu0
        %1786 = vmatpush.bf16.msra.mxu0 %v1590
        %1787 = vmatpush.bf16.msra.mxu0 %v1586
        %1788 = vmatpush.bf16.msra.mxu0 %v1582
        %1789 = vmatpush.bf16.msra.mxu0 %v1578
        %1790 = vmatpush.bf16.msra.mxu0 %v1574
        %1791 = vmatpush.bf16.msra.mxu0 %v1570
        %1792 = vmatpush.bf16.msra.mxu0 %v1566
        %1793 = vmatpush.bf16.msra.mxu0 %v1562
        %1794 = vmatmul.bf16.gmra.mxu0 %v1250
        %v1795 = vpop.f32.mrf.mxu0
        %v1796 = vadd.f32 %v1753, %v1795
        %v1797 = vpop.f32.mrf.mxu0
        %v1798 = vadd.f32 %v1755, %v1797
        %1799 = vmatmul.bf16.gmra.mxu0 %v1252
        %v1800 = vpop.f32.mrf.mxu0
        %v1801 = vadd.f32 %v1758, %v1800
        %v1802 = vpop.f32.mrf.mxu0
        %v1803 = vadd.f32 %v1760, %v1802
        %1804 = vmatmul.bf16.gmra.mxu0 %v1254
        %v1805 = vpop.f32.mrf.mxu0
        %v1806 = vadd.f32 %v1763, %v1805
        %v1807 = vpop.f32.mrf.mxu0
        %v1808 = vadd.f32 %v1765, %v1807
        %1809 = vmatmul.bf16.gmra.mxu0 %v1256
        %v1810 = vpop.f32.mrf.mxu0
        %v1811 = vadd.f32 %v1768, %v1810
        %v1812 = vpop.f32.mrf.mxu0
        %v1813 = vadd.f32 %v1770, %v1812
        %1814 = vmatmul.bf16.gmra.mxu0 %v1258
        %v1815 = vpop.f32.mrf.mxu0
        %v1816 = vadd.f32 %v1773, %v1815
        %v1817 = vpop.f32.mrf.mxu0
        %v1818 = vadd.f32 %v1775, %v1817
        %1819 = vmatmul.bf16.gmra.mxu0 %v1260
        %v1820 = vpop.f32.mrf.mxu0
        %v1821 = vadd.f32 %v1778, %v1820
        %v1822 = vpop.f32.mrf.mxu0
        %v1823 = vadd.f32 %v1780, %v1822
        %1824 = vmatmul.bf16.gmra.mxu0 %v1262
        %v1825 = vpop.f32.mrf.mxu0
        %v1826 = vadd.f32 %v1783, %v1825
        %v1827 = vpop.f32.mrf.mxu0
        %1828 = vdwg.mxu0
        %1829 = vmatpush.bf16.msra.mxu0 %v1559
        %1830 = vmatpush.bf16.msra.mxu0 %v1555
        %1831 = vmatpush.bf16.msra.mxu0 %v1551
        %1832 = vmatpush.bf16.msra.mxu0 %v1547
        %1833 = vmatpush.bf16.msra.mxu0 %v1543
        %1834 = vmatpush.bf16.msra.mxu0 %v1539
        %1835 = vmatpush.bf16.msra.mxu0 %v1535
        %1836 = vmatpush.bf16.msra.mxu0 %v1531
        %1837 = vmatmul.bf16.gmra.mxu0 %v1249
        %v1838 = vpop.f32.mrf.mxu0
        %v1839 = vadd.f32 %v1331, %v1838
        %v1840 = vpop.f32.mrf.mxu0
        %v1841 = vadd.f32 %v1331, %v1840
        %1842 = vmatmul.bf16.gmra.mxu0 %v1251
        %v1843 = vpop.f32.mrf.mxu0
        %v1844 = vadd.f32 %v1331, %v1843
        %v1845 = vpop.f32.mrf.mxu0
        %v1846 = vadd.f32 %v1331, %v1845
        %1847 = vmatmul.bf16.gmra.mxu0 %v1253
        %v1848 = vpop.f32.mrf.mxu0
        %v1849 = vadd.f32 %v1331, %v1848
        %v1850 = vpop.f32.mrf.mxu0
        %v1851 = vadd.f32 %v1331, %v1850
        %1852 = vmatmul.bf16.gmra.mxu0 %v1255
        %v1853 = vpop.f32.mrf.mxu0
        %v1854 = vadd.f32 %v1331, %v1853
        %v1855 = vpop.f32.mrf.mxu0
        %v1856 = vadd.f32 %v1331, %v1855
        %1857 = vmatmul.bf16.gmra.mxu0 %v1257
        %v1858 = vpop.f32.mrf.mxu0
        %v1859 = vadd.f32 %v1331, %v1858
        %v1860 = vpop.f32.mrf.mxu0
        %v1861 = vadd.f32 %v1331, %v1860
        %1862 = vmatmul.bf16.gmra.mxu0 %v1259
        %v1863 = vpop.f32.mrf.mxu0
        %v1864 = vadd.f32 %v1331, %v1863
        %v1865 = vpop.f32.mrf.mxu0
        %v1866 = vadd.f32 %v1331, %v1865
        %1867 = vmatmul.bf16.gmra.mxu0 %v1261
        %v1868 = vpop.f32.mrf.mxu0
        %v1869 = vadd.f32 %v1331, %v1868
        %v1870 = vpop.f32.mrf.mxu0
        %1871 = vdwg.mxu0
        %1872 = vmatpush.bf16.msra.mxu0 %v1591
        %1873 = vmatpush.bf16.msra.mxu0 %v1587
        %1874 = vmatpush.bf16.msra.mxu0 %v1583
        %1875 = vmatpush.bf16.msra.mxu0 %v1579
        %1876 = vmatpush.bf16.msra.mxu0 %v1575
        %1877 = vmatpush.bf16.msra.mxu0 %v1571
        %1878 = vmatpush.bf16.msra.mxu0 %v1567
        %1879 = vmatpush.bf16.msra.mxu0 %v1563
        %1880 = vmatmul.bf16.gmra.mxu0 %v1250
        %v1881 = vpop.f32.mrf.mxu0
        %v1882 = vadd.f32 %v1839, %v1881
        %v1883 = vpop.f32.mrf.mxu0
        %v1884 = vadd.f32 %v1841, %v1883
        %1885 = vmatmul.bf16.gmra.mxu0 %v1252
        %v1886 = vpop.f32.mrf.mxu0
        %v1887 = vadd.f32 %v1844, %v1886
        %v1888 = vpop.f32.mrf.mxu0
        %v1889 = vadd.f32 %v1846, %v1888
        %1890 = vmatmul.bf16.gmra.mxu0 %v1254
        %v1891 = vpop.f32.mrf.mxu0
        %v1892 = vadd.f32 %v1849, %v1891
        %v1893 = vpop.f32.mrf.mxu0
        %v1894 = vadd.f32 %v1851, %v1893
        %1895 = vmatmul.bf16.gmra.mxu0 %v1256
        %v1896 = vpop.f32.mrf.mxu0
        %v1897 = vadd.f32 %v1854, %v1896
        %v1898 = vpop.f32.mrf.mxu0
        %v1899 = vadd.f32 %v1856, %v1898
        %1900 = vmatmul.bf16.gmra.mxu0 %v1258
        %v1901 = vpop.f32.mrf.mxu0
        %v1902 = vadd.f32 %v1859, %v1901
        %v1903 = vpop.f32.mrf.mxu0
        %v1904 = vadd.f32 %v1861, %v1903
        %1905 = vmatmul.bf16.gmra.mxu0 %v1260
        %v1906 = vpop.f32.mrf.mxu0
        %v1907 = vadd.f32 %v1864, %v1906
        %v1908 = vpop.f32.mrf.mxu0
        %v1909 = vadd.f32 %v1866, %v1908
        %1910 = vmatmul.bf16.gmra.mxu0 %v1262
        %v1911 = vpop.f32.mrf.mxu0
        %v1912 = vadd.f32 %v1869, %v1911
        %v1913 = vpop.f32.mrf.mxu0
        %1914 = vdwg.mxu0
        %1915 = vmatpush.bf16.msra.mxu0 %v1560
        %1916 = vmatpush.bf16.msra.mxu0 %v1556
        %1917 = vmatpush.bf16.msra.mxu0 %v1552
        %1918 = vmatpush.bf16.msra.mxu0 %v1548
        %1919 = vmatpush.bf16.msra.mxu0 %v1544
        %1920 = vmatpush.bf16.msra.mxu0 %v1540
        %1921 = vmatpush.bf16.msra.mxu0 %v1536
        %1922 = vmatpush.bf16.msra.mxu0 %v1532
        %1923 = vmatmul.bf16.gmra.mxu0 %v1249
        %v1924 = vpop.f32.mrf.mxu0
        %v1925 = vadd.f32 %v1332, %v1924
        %v1926 = vpop.f32.mrf.mxu0
        %v1927 = vadd.f32 %v1332, %v1926
        %1928 = vmatmul.bf16.gmra.mxu0 %v1251
        %v1929 = vpop.f32.mrf.mxu0
        %v1930 = vadd.f32 %v1332, %v1929
        %v1931 = vpop.f32.mrf.mxu0
        %v1932 = vadd.f32 %v1332, %v1931
        %1933 = vmatmul.bf16.gmra.mxu0 %v1253
        %v1934 = vpop.f32.mrf.mxu0
        %v1935 = vadd.f32 %v1332, %v1934
        %v1936 = vpop.f32.mrf.mxu0
        %v1937 = vadd.f32 %v1332, %v1936
        %1938 = vmatmul.bf16.gmra.mxu0 %v1255
        %v1939 = vpop.f32.mrf.mxu0
        %v1940 = vadd.f32 %v1332, %v1939
        %v1941 = vpop.f32.mrf.mxu0
        %v1942 = vadd.f32 %v1332, %v1941
        %1943 = vmatmul.bf16.gmra.mxu0 %v1257
        %v1944 = vpop.f32.mrf.mxu0
        %v1945 = vadd.f32 %v1332, %v1944
        %v1946 = vpop.f32.mrf.mxu0
        %v1947 = vadd.f32 %v1332, %v1946
        %1948 = vmatmul.bf16.gmra.mxu0 %v1259
        %v1949 = vpop.f32.mrf.mxu0
        %v1950 = vadd.f32 %v1332, %v1949
        %v1951 = vpop.f32.mrf.mxu0
        %v1952 = vadd.f32 %v1332, %v1951
        %1953 = vmatmul.bf16.gmra.mxu0 %v1261
        %v1954 = vpop.f32.mrf.mxu0
        %v1955 = vadd.f32 %v1332, %v1954
        %v1956 = vpop.f32.mrf.mxu0
        %1957 = vdwg.mxu0
        %1958 = vmatpush.bf16.msra.mxu0 %v1592
        %1959 = vmatpush.bf16.msra.mxu0 %v1588
        %1960 = vmatpush.bf16.msra.mxu0 %v1584
        %1961 = vmatpush.bf16.msra.mxu0 %v1580
        %1962 = vmatpush.bf16.msra.mxu0 %v1576
        %1963 = vmatpush.bf16.msra.mxu0 %v1572
        %1964 = vmatpush.bf16.msra.mxu0 %v1568
        %1965 = vmatpush.bf16.msra.mxu0 %v1564
        %1966 = vmatmul.bf16.gmra.mxu0 %v1250
        %v1967 = vpop.f32.mrf.mxu0
        %v1968 = vadd.f32 %v1925, %v1967
        %v1969 = vpop.f32.mrf.mxu0
        %v1970 = vadd.f32 %v1927, %v1969
        %1971 = vmatmul.bf16.gmra.mxu0 %v1252
        %v1972 = vpop.f32.mrf.mxu0
        %v1973 = vadd.f32 %v1930, %v1972
        %v1974 = vpop.f32.mrf.mxu0
        %v1975 = vadd.f32 %v1932, %v1974
        %1976 = vmatmul.bf16.gmra.mxu0 %v1254
        %v1977 = vpop.f32.mrf.mxu0
        %v1978 = vadd.f32 %v1935, %v1977
        %v1979 = vpop.f32.mrf.mxu0
        %v1980 = vadd.f32 %v1937, %v1979
        %1981 = vmatmul.bf16.gmra.mxu0 %v1256
        %v1982 = vpop.f32.mrf.mxu0
        %v1983 = vadd.f32 %v1940, %v1982
        %v1984 = vpop.f32.mrf.mxu0
        %v1985 = vadd.f32 %v1942, %v1984
        %1986 = vmatmul.bf16.gmra.mxu0 %v1258
        %v1987 = vpop.f32.mrf.mxu0
        %v1988 = vadd.f32 %v1945, %v1987
        %v1989 = vpop.f32.mrf.mxu0
        %v1990 = vadd.f32 %v1947, %v1989
        %1991 = vmatmul.bf16.gmra.mxu0 %v1260
        %v1992 = vpop.f32.mrf.mxu0
        %v1993 = vadd.f32 %v1950, %v1992
        %v1994 = vpop.f32.mrf.mxu0
        %v1995 = vadd.f32 %v1952, %v1994
        %1996 = vmatmul.bf16.gmra.mxu0 %v1262
        %v1997 = vpop.f32.mrf.mxu0
        %v1998 = vadd.f32 %v1955, %v1997
        %v1999 = vpop.f32.mrf.mxu0
        %2000 = vdwg.mxu0
        %v2001 = vmul.f32 %v1710, 1.442695
        %v2002 = vpow.pop %v2001
        %v2003 = vmul.f32 %v1796, 1.442695
        %v2004 = vpow.pop %v2003
        %v2005 = vmul.f32 %v1712, 1.442695
        %v2006 = vpow.pop %v2005
        %v2007 = vmul.f32 %v1798, 1.442695
        %v2008 = vpow.pop %v2007
        %v2009 = vmul.f32 %v1715, 1.442695
        %v2010 = vpow.pop %v2009
        %v2011 = vmul.f32 %v1801, 1.442695
        %v2012 = vpow.pop %v2011
        %v2013 = vmul.f32 %v1717, 1.442695
        %v2014 = vpow.pop %v2013
        %v2015 = vmul.f32 %v1803, 1.442695
        %v2016 = vpow.pop %v2015
        %v2017 = vmul.f32 %v1720, 1.442695
        %v2018 = vpow.pop %v2017
        %v2019 = vmul.f32 %v1806, 1.442695
        %v2020 = vpow.pop %v2019
        %v2021 = vmul.f32 %v1722, 1.442695
        %v2022 = vpow.pop %v2021
        %v2023 = vmul.f32 %v1808, 1.442695
        %v2024 = vpow.pop %v2023
        %v2025 = vmul.f32 %v1725, 1.442695
        %v2026 = vpow.pop %v2025
        %v2027 = vmul.f32 %v1811, 1.442695
        %v2028 = vpow.pop %v2027
        %v2029 = vmul.f32 %v1727, 1.442695
        %v2030 = vpow.pop %v2029
        %v2031 = vmul.f32 %v1813, 1.442695
        %v2032 = vpow.pop %v2031
        %v2033 = vmul.f32 %v1730, 1.442695
        %v2034 = vpow.pop %v2033
        %v2035 = vmul.f32 %v1816, 1.442695
        %v2036 = vpow.pop %v2035
        %v2037 = vmul.f32 %v1732, 1.442695
        %v2038 = vpow.pop %v2037
        %v2039 = vmul.f32 %v1818, 1.442695
        %v2040 = vpow.pop %v2039
        %v2041 = vmul.f32 %v1735, 1.442695
        %v2042 = vpow.pop %v2041
        %v2043 = vmul.f32 %v1821, 1.442695
        %v2044 = vpow.pop %v2043
        %v2045 = vmul.f32 %v1737, 1.442695
        %v2046 = vpow.pop %v2045
        %v2047 = vmul.f32 %v1823, 1.442695
        %v2048 = vpow.pop %v2047
        %v2049 = vmul.f32 %v1740, 1.442695
        %v2050 = vpow.pop %v2049
        %v2051 = vmul.f32 %v1826, 1.442695
        %v2052 = vpow.pop %v2051
        %v2053 = vmul.f32 %v1223, %v2002
        %v2054 = vmul.f32 %v1224, %v2004
        %v2055 = vmul.f32 %v1225, %v2006
        %v2056 = vmul.f32 %v1226, %v2008
        %v2057 = vmul.f32 %v1227, %v2010
        %v2058 = vmul.f32 %v1228, %v2012
        %v2059 = vmul.f32 %v1229, %v2014
        %v2060 = vmul.f32 %v1230, %v2016
        %v2061 = vmul.f32 %v1231, %v2018
        %v2062 = vmul.f32 %v1232, %v2020
        %v2063 = vmul.f32 %v1233, %v2022
        %v2064 = vmul.f32 %v1234, %v2024
        %v2065 = vmul.f32 %v1235, %v2026
        %v2066 = vmul.f32 %v1236, %v2028
        %v2067 = vmul.f32 %v1237, %v2030
        %v2068 = vmul.f32 %v1238, %v2032
        %v2069 = vmul.f32 %v1239, %v2034
        %v2070 = vmul.f32 %v1240, %v2036
        %v2071 = vmul.f32 %v1241, %v2038
        %v2072 = vmul.f32 %v1242, %v2040
        %v2073 = vmul.f32 %v1243, %v2042
        %v2074 = vmul.f32 %v1244, %v2044
        %v2075 = vmul.f32 %v1245, %v2046
        %v2076 = vmul.f32 %v1246, %v2048
        %v2077 = vmul.f32 %v1247, %v2050
        %v2078 = vmul.f32 %v1248, %v2052
        %v2079 = vadd.f32 %v2053, %v1882
        %v2080 = vadd.f32 %v2054, %v1968
        %v2081 = vadd.f32 %v2055, %v1884
        %v2082 = vadd.f32 %v2056, %v1970
        %v2083 = vadd.f32 %v2057, %v1887
        %v2084 = vadd.f32 %v2058, %v1973
        %v2085 = vadd.f32 %v2059, %v1889
        %v2086 = vadd.f32 %v2060, %v1975
        %v2087 = vadd.f32 %v2061, %v1892
        %v2088 = vadd.f32 %v2062, %v1978
        %v2089 = vadd.f32 %v2063, %v1894
        %v2090 = vadd.f32 %v2064, %v1980
        %v2091 = vadd.f32 %v2065, %v1897
        %v2092 = vadd.f32 %v2066, %v1983
        %v2093 = vadd.f32 %v2067, %v1899
        %v2094 = vadd.f32 %v2068, %v1985
        %v2095 = vadd.f32 %v2069, %v1902
        %v2096 = vadd.f32 %v2070, %v1988
        %v2097 = vadd.f32 %v2071, %v1904
        %v2098 = vadd.f32 %v2072, %v1990
        %v2099 = vadd.f32 %v2073, %v1907
        %v2100 = vadd.f32 %v2074, %v1993
        %v2101 = vadd.f32 %v2075, %v1909
        %v2102 = vadd.f32 %v2076, %v1995
        %v2103 = vadd.f32 %v2077, %v1912
        %v2104 = vadd.f32 %v2078, %v1998
        %2105 = vst [vmem:[%s343] sm:$0xff] %v2079
        %2106 = vst [vmem:[%s343 + $0x8] sm:$0xff] %v2080
        %2107 = vst [vmem:[%s343 + $0x10] sm:$0xff] %v2081
        %2108 = vst [vmem:[%s343 + $0x18] sm:$0xff] %v2082
        %2109 = vst [vmem:[%s343 + $0x20] sm:$0xff] %v2083
        %2110 = vst [vmem:[%s343 + $0x28] sm:$0xff] %v2084
        %2111 = vst [vmem:[%s343 + $0x30] sm:$0xff] %v2085
        %2112 = vst [vmem:[%s343 + $0x38] sm:$0xff] %v2086
        %2113 = vst [vmem:[%s343 + $0x40] sm:$0xff] %v2087
        %2114 = vst [vmem:[%s343 + $0x48] sm:$0xff] %v2088
        %2115 = vst [vmem:[%s343 + $0x50] sm:$0xff] %v2089
        %2116 = vst [vmem:[%s343 + $0x58] sm:$0xff] %v2090
        %2117 = vst [vmem:[%s343 + $0x60] sm:$0xff] %v2091
        %2118 = vst [vmem:[%s343 + $0x68] sm:$0xff] %v2092
        %2119 = vst [vmem:[%s343 + $0x70] sm:$0xff] %v2093
        %2120 = vst [vmem:[%s343 + $0x78] sm:$0xff] %v2094
        %2121 = vst [vmem:[%s343 + $0x80] sm:$0xff] %v2095
        %2122 = vst [vmem:[%s343 + $0x88] sm:$0xff] %v2096
        %2123 = vst [vmem:[%s343 + $0x90] sm:$0xff] %v2097
        %2124 = vst [vmem:[%s343 + $0x98] sm:$0xff] %v2098
        %2125 = vst [vmem:[%s343 + $0xa0] sm:$0xff] %v2099
        %2126 = vst [vmem:[%s343 + $0xa8] sm:$0xff] %v2100
        %2127 = vst [vmem:[%s343 + $0xb0] sm:$0xff] %v2101
        %2128 = vst [vmem:[%s343 + $0xb8] sm:$0xff] %v2102
        %2129 = vst [vmem:[%s343 + $0xc0] sm:$0xff] %v2103
        %2130 = vst [vmem:[%s343 + $0xc8] sm:$0xff] %v2104
        %v2131 = vadd.f32 %v854, %v940
        %2132 = vadd.xlane.f32.xlu0 %v2131
        %v2133 = vpop.xlane.xlu0 %2132
        %v2134 = vadd.f32 %v856, %v942
        %2135 = vadd.xlane.f32.xlu0 %v2134
        %v2136 = vpop.xlane.xlu0 %2135
        %v2137 = vadd.f32 %v859, %v945
        %2138 = vadd.xlane.f32.xlu0 %v2137
        %v2139 = vpop.xlane.xlu0 %2138
        %v2140 = vadd.f32 %v861, %v947
        %2141 = vadd.xlane.f32.xlu0 %v2140
        %v2142 = vpop.xlane.xlu0 %2141
        %v2143 = vadd.f32 %v864, %v950
        %2144 = vadd.xlane.f32.xlu0 %v2143
        %v2145 = vpop.xlane.xlu0 %2144
        %v2146 = vadd.f32 %v866, %v952
        %2147 = vadd.xlane.f32.xlu0 %v2146
        %v2148 = vpop.xlane.xlu0 %2147
        %v2149 = vadd.f32 %v869, %v955
        %2150 = vadd.xlane.f32.xlu0 %v2149
        %v2151 = vpop.xlane.xlu0 %2150
        %v2152 = vadd.f32 %v871, %v957
        %2153 = vadd.xlane.f32.xlu0 %v2152
        %v2154 = vpop.xlane.xlu0 %2153
        %v2155 = vadd.f32 %v874, %v960
        %2156 = vadd.xlane.f32.xlu0 %v2155
        %v2157 = vpop.xlane.xlu0 %2156
        %v2158 = vadd.f32 %v876, %v962
        %2159 = vadd.xlane.f32.xlu0 %v2158
        %v2160 = vpop.xlane.xlu0 %2159
        %v2161 = vadd.f32 %v879, %v965
        %2162 = vadd.xlane.f32.xlu0 %v2161
        %v2163 = vpop.xlane.xlu0 %2162
        %v2164 = vadd.f32 %v881, %v967
        %2165 = vadd.xlane.f32.xlu0 %v2164
        %v2166 = vpop.xlane.xlu0 %2165
        %v2167 = vadd.f32 %v884, %v970
        %2168 = vadd.xlane.f32.xlu0 %v2167
        %v2169 = vpop.xlane.xlu0 %2168
        %v2170 = vadd.f32 %v1710, %v1796
        %2171 = vadd.xlane.f32.xlu0 %v2170
        %v2172 = vpop.xlane.xlu0 %2171
        %v2173 = vadd.f32 %v1712, %v1798
        %2174 = vadd.xlane.f32.xlu0 %v2173
        %v2175 = vpop.xlane.xlu0 %2174
        %v2176 = vadd.f32 %v1715, %v1801
        %2177 = vadd.xlane.f32.xlu0 %v2176
        %v2178 = vpop.xlane.xlu0 %2177
        %v2179 = vadd.f32 %v1717, %v1803
        %2180 = vadd.xlane.f32.xlu0 %v2179
        %v2181 = vpop.xlane.xlu0 %2180
        %v2182 = vadd.f32 %v1720, %v1806
        %2183 = vadd.xlane.f32.xlu0 %v2182
        %v2184 = vpop.xlane.xlu0 %2183
        %v2185 = vadd.f32 %v1722, %v1808
        %2186 = vadd.xlane.f32.xlu0 %v2185
        %v2187 = vpop.xlane.xlu0 %2186
        %v2188 = vadd.f32 %v1725, %v1811
        %2189 = vadd.xlane.f32.xlu0 %v2188
        %v2190 = vpop.xlane.xlu0 %2189
        %v2191 = vadd.f32 %v1727, %v1813
        %2192 = vadd.xlane.f32.xlu0 %v2191
        %v2193 = vpop.xlane.xlu0 %2192
        %v2194 = vadd.f32 %v1730, %v1816
        %2195 = vadd.xlane.f32.xlu0 %v2194
        %v2196 = vpop.xlane.xlu0 %2195
        %v2197 = vadd.f32 %v1732, %v1818
        %2198 = vadd.xlane.f32.xlu0 %v2197
        %v2199 = vpop.xlane.xlu0 %2198
        %v2200 = vadd.f32 %v1735, %v1821
        %2201 = vadd.xlane.f32.xlu0 %v2200
        %v2202 = vpop.xlane.xlu0 %2201
        %v2203 = vadd.f32 %v1737, %v1823
        %2204 = vadd.xlane.f32.xlu0 %v2203
        %v2205 = vpop.xlane.xlu0 %2204
        %v2206 = vadd.f32 %v1740, %v1826
        %2207 = vadd.xlane.f32.xlu0 %v2206
        %v2208 = vpop.xlane.xlu0 %2207
        %v2209 = vadd.f32 %v2133, %v2172
        %v2210 = vadd.f32 %v2136, %v2175
        %v2211 = vadd.f32 %v2139, %v2178
        %v2212 = vadd.f32 %v2142, %v2181
        %v2213 = vadd.f32 %v2145, %v2184
        %v2214 = vadd.f32 %v2148, %v2187
        %v2215 = vadd.f32 %v2151, %v2190
        %v2216 = vadd.f32 %v2154, %v2193
        %v2217 = vadd.f32 %v2157, %v2196
        %v2218 = vadd.f32 %v2160, %v2199
        %v2219 = vadd.f32 %v2163, %v2202
        %v2220 = vadd.f32 %v2166, %v2205
        %v2221 = vadd.f32 %v2169, %v2208
        %vm2222 = vcmask 7168
        %2223 = vst.msk [vmem:[%s349] sm:$0xff] %vm2222, %v2209
        %2224 = vst.msk [vmem:[%s349 + $0x8] sm:$0xff] %vm2222, %v2210
        %2225 = vst.msk [vmem:[%s349 + $0x10] sm:$0xff] %vm2222, %v2211
        %2226 = vst.msk [vmem:[%s349 + $0x18] sm:$0xff] %vm2222, %v2212
        %2227 = vst.msk [vmem:[%s349 + $0x20] sm:$0xff] %vm2222, %v2213
        %2228 = vst.msk [vmem:[%s349 + $0x28] sm:$0xff] %vm2222, %v2214
        %2229 = vst.msk [vmem:[%s349 + $0x30] sm:$0xff] %vm2222, %v2215
        %2230 = vst.msk [vmem:[%s349 + $0x38] sm:$0xff] %vm2222, %v2216
        %2231 = vst.msk [vmem:[%s349 + $0x40] sm:$0xff] %vm2222, %v2217
        %2232 = vst.msk [vmem:[%s349 + $0x48] sm:$0xff] %vm2222, %v2218
        %2233 = vst.msk [vmem:[%s349 + $0x50] sm:$0xff] %vm2222, %v2219
        %2234 = vst.msk [vmem:[%s349 + $0x58] sm:$0xff] %vm2222, %v2220
        %2235 = vst.msk [vmem:[%s349 + $0x60] sm:$0xff] %vm2222, %v2221
        %s2236 = sand.u32 %s144, 1
        %s2237 = scalar_lea.sflag [#allocation4], %s2236
        %s2238 = sand.u32 %s144, 1
        %s2239 = smul.addr %s2238, 208
        %s2240 = scalar_lea.vmem [#allocation11], %s2239
        %s2241 = sand.u32 %s170, 1
        %s2242 = sand.u32 %s170, 1
        %s2243 = smul.addr %s2242, 104
        %s2244 = scalar_lea.vmem [#allocation12], %s2243
        // Predicated region
        $region61: #{tpu_custom_call.1} parent=39 // pred_check
          %p2245 = pneg %p154
        $region62: #{tpu_custom_call.1} parent=39 // pred_check_branch
          %2247 = sbr.rel (%p2245) target = $region64
        $region63: #{tpu_custom_call.1} parent=39 // pred_region
          %s2248 = smul.u32 13, %s26
          %s2249 = ssub.s32 25, %s2248
          %p2250 = scmp.lt.s32.totalorder %s2249, 13
          %s2251 = scalar_select %p2250, %s2249, 13
          %s2252 = smul.u32 8, %s2251
          %s2253 = smul.u32 %s2252, 2
          %s2254 = ssub.s32 208, %s2253
          %s2255 = sshll.u32 %s2254, 4
          %2256 = vsyncadd %s2237, %s2255
          %p2257 = scmp.ne.s32.totalorder 0, %s2253
          %s2258 = smul.addr %s2248, 2
          %s2259 = smul.addr %s2258, 8
          %s2260 = scalar_lea.hbm %s5, %s2259
          %s2261 = smul.u32 16, %s2251
          %s2262 = sshll.u32 %s2240, 4
          %s2263 = int_to_ptr.vmem [resolvable:$true] %s2262
          %s2264 = sshll.u32 %s2260, 4
          %s2265 = int_to_ptr.hbm [resolvable:$true] %s2264
          %s2266 = sshll.u32 %s2261, 4
          %2270 = dma.vmem_to_hbm [thread:$0]  (%p2257), %s2263, %s2266, %s2265, %s2237, 256, 256, 16
        $region64: #{tpu_custom_call.1} parent=39 // pred_fallthru
          _
        // Predicated region
        $region65: #{tpu_custom_call.1} parent=39 // pred_check
          %p2271 = pneg %p180
        $region66: #{tpu_custom_call.1} parent=39 // pred_check_branch
          %2273 = sbr.rel (%p2271) target = $region68
        $region67: #{tpu_custom_call.1} parent=39 // pred_region
          %s2274 = smul.u32 13, %s26
          %s2275 = ssub.s32 25, %s2274
          %p2276 = scmp.lt.s32.totalorder %s2275, 13
          %s2277 = scalar_select %p2276, %s2275, 13
          %s2278 = smul.u32 8, %s2277
          %p2279 = scmp.ne.s32.totalorder 0, %s2278
          %s2280 = smul.addr %s2274, 8
          %s2281 = scalar_lea.vmem %s6, %s2280
          // Predicated region
          $region69: #{tpu_custom_call.1} parent=67 // pred_check
            %p2282 = pneg %p2279
          $region70: #{tpu_custom_call.1} parent=67 // pred_check_branch
            %2284 = sbr.rel (%p2282) target = $region72
          $region71: #{tpu_custom_call.1} parent=67 // pred_region
            // Predicated region
            $region73: #{tpu_custom_call.1} parent=71 // pred_check
              _
            $region74: #{tpu_custom_call.1} parent=71 // pred_check_branch
              %2286 = sbr.rel (0) target = $region76
            $region75: #{tpu_custom_call.1} parent=71 // pred_region
              // Predicated region
              $region95: #{tpu_custom_call.1} parent=75 // pred_check
                _
              $region96: #{tpu_custom_call.1} parent=75 // pred_check_branch
                %2361 = sbr.rel (0) target = $region98
              $region97: #{tpu_custom_call.1} parent=75 // pred_region
                %s2362 = sdiv.u32.pop %s2277, 13
                %s2363 = srem.u32.pop %s2277, 13
                // While loop
                $region99: #{tpu_custom_call.1} parent=97 // loop_pre_header
                  _
                $region100: #{tpu_custom_call.1} parent=97 // loop_header
                  %s2365 = sphi 0, %s2367
                  %p2366 = scmp.ge.s32.totalorder %s2365, %s2362
                  %s2370 = sphi 0, %s2401
                  %s2371 = sphi %s2244, %s2404
                  %s2372 = sphi %s2281, %s2405
                $region101: #{tpu_custom_call.1} parent=97 // loop_header_branch
                  %2369 = sbr.rel (%p2366) target = $region105
                $region102: #{tpu_custom_call.1} parent=97 // loop_body
                  %v2373 = vld [vmem:[%s2371] sm:$0xff]
                  %2374 = vst [vmem:[%s2372] sm:$0xff] %v2373
                  %v2375 = vld [vmem:[%s2371 + $0x8] sm:$0xff]
                  %2376 = vst [vmem:[%s2372 + $0x8] sm:$0xff] %v2375
                  %v2377 = vld [vmem:[%s2371 + $0x10] sm:$0xff]
                  %2378 = vst [vmem:[%s2372 + $0x10] sm:$0xff] %v2377
                  %v2379 = vld [vmem:[%s2371 + $0x18] sm:$0xff]
                  %2380 = vst [vmem:[%s2372 + $0x18] sm:$0xff] %v2379
                  %v2381 = vld [vmem:[%s2371 + $0x20] sm:$0xff]
                  %2382 = vst [vmem:[%s2372 + $0x20] sm:$0xff] %v2381
                  %v2383 = vld [vmem:[%s2371 + $0x28] sm:$0xff]
                  %2384 = vst [vmem:[%s2372 + $0x28] sm:$0xff] %v2383
                  %v2385 = vld [vmem:[%s2371 + $0x30] sm:$0xff]
                  %2386 = vst [vmem:[%s2372 + $0x30] sm:$0xff] %v2385
                  %v2387 = vld [vmem:[%s2371 + $0x38] sm:$0xff]
                  %2388 = vst [vmem:[%s2372 + $0x38] sm:$0xff] %v2387
                  %v2389 = vld [vmem:[%s2371 + $0x40] sm:$0xff]
                  %2390 = vst [vmem:[%s2372 + $0x40] sm:$0xff] %v2389
                  %v2391 = vld [vmem:[%s2371 + $0x48] sm:$0xff]
                  %2392 = vst [vmem:[%s2372 + $0x48] sm:$0xff] %v2391
                  %v2393 = vld [vmem:[%s2371 + $0x50] sm:$0xff]
                  %2394 = vst [vmem:[%s2372 + $0x50] sm:$0xff] %v2393
                  %v2395 = vld [vmem:[%s2371 + $0x58] sm:$0xff]
                  %2396 = vst [vmem:[%s2372 + $0x58] sm:$0xff] %v2395
                  %v2397 = vld [vmem:[%s2371 + $0x60] sm:$0xff]
                  %2398 = vst [vmem:[%s2372 + $0x60] sm:$0xff] %v2397
                  %s2399 = sadd.s32 1, %s2370
                  %p2400 = scmp.ge.s32.totalorder %s2399, %s2362
                  %s2401 = scalar_select %p2400, 0, %s2399
                  %s2402 = smul.u32 %s2401, 104
                  %s2403 = smul.u32 %s2401, 104
                  %s2404 = scalar_lea.vmem %s2244, %s2402 [#allocation12]
                  %s2405 = scalar_lea.vmem %s2281, %s2403
                $region103: #{tpu_custom_call.1} parent=97 // loop_footer
                  %s2367 = sadd.s32 %s2365, 1
                $region104: #{tpu_custom_call.1} parent=97 // loop_footer_branch
                  %2364 = sbr.rel target = $region100
                $region105: #{tpu_custom_call.1} parent=97 // loop_exit
                  _
                %s2406 = sdiv.u32.pop %s2277, 13
                %s2407 = srem.u32.pop %s2277, 13
                %s2408 = smul.u32 %s2406, 13
                %s2409 = smul.u32 8, %s2408
                %s2410 = scalar_lea.vmem %s2244, %s2409 [#allocation12]
                %s2411 = smul.u32 8, %s2408
                %s2412 = scalar_lea.vmem %s2281, %s2411
                // While loop
                $region106: #{tpu_custom_call.1} parent=97 // loop_pre_header
                  _
                $region107: #{tpu_custom_call.1} parent=97 // loop_header
                  %s2414 = sphi 0, %s2416
                  %p2415 = scmp.ge.s32.totalorder %s2414, %s2407
                  %s2419 = sphi 0, %s2426
                  %s2420 = sphi %s2410, %s2429
                  %s2421 = sphi %s2412, %s2430
                $region108: #{tpu_custom_call.1} parent=97 // loop_header_branch
                  %2418 = sbr.rel (%p2415) target = $region112
                $region109: #{tpu_custom_call.1} parent=97 // loop_body
                  %v2422 = vld [vmem:[%s2420] sm:$0xff]
                  %2423 = vst [vmem:[%s2421] sm:$0xff] %v2422
                  %s2424 = sadd.s32 1, %s2419
                  %p2425 = scmp.ge.s32.totalorder %s2424, %s2407
                  %s2426 = scalar_select %p2425, 0, %s2424
                  %s2427 = smul.u32 %s2426, 8
                  %s2428 = smul.u32 %s2426, 8
                  %s2429 = scalar_lea.vmem %s2410, %s2427 [#allocation12]
                  %s2430 = scalar_lea.vmem %s2412, %s2428
                $region110: #{tpu_custom_call.1} parent=97 // loop_footer
                  %s2416 = sadd.s32 %s2414, 1
                $region111: #{tpu_custom_call.1} parent=97 // loop_footer_branch
                  %2413 = sbr.rel target = $region107
                $region112: #{tpu_custom_call.1} parent=97 // loop_exit
                  _
              $region98: #{tpu_custom_call.1} parent=75 // pred_fallthru
                _
              // Predicated region
              $region113: #{tpu_custom_call.1} parent=75 // pred_check
                _
              $region114: #{tpu_custom_call.1} parent=75 // pred_check_branch
                %2432 = sbr.rel target = $region116
              $region115: #{tpu_custom_call.1} parent=75 // pred_region
                _
              $region116: #{tpu_custom_call.1} parent=75 // pred_fallthru
                _
            $region76: #{tpu_custom_call.1} parent=71 // pred_fallthru
              _
            // Predicated region
            $region77: #{tpu_custom_call.1} parent=71 // pred_check
              _
            $region78: #{tpu_custom_call.1} parent=71 // pred_check_branch
              %2288 = sbr.rel target = $region80
            $region79: #{tpu_custom_call.1} parent=71 // pred_region
              %s2290 = ssub.s32 256, 1
              %s2291 = sdiv.u32.pop %s2277, 13
              %s2292 = srem.u32.pop %s2277, 13
              // While loop
              $region81: #{tpu_custom_call.1} parent=79 // loop_pre_header
                _
              $region82: #{tpu_custom_call.1} parent=79 // loop_header
                %s2294 = sphi 0, %s2296
                %p2295 = scmp.ge.s32.totalorder %s2294, %s2291
                %s2299 = sphi 0, %s2330
                %s2300 = sphi %s2244, %s2333
                %s2301 = sphi %s2281, %s2334
              $region83: #{tpu_custom_call.1} parent=79 // loop_header_branch
                %2298 = sbr.rel (%p2295) target = $region87
              $region84: #{tpu_custom_call.1} parent=79 // loop_body
                %v2302 = vld [vmem:[%s2300] sm:%s2290]
                %2303 = vst [vmem:[%s2301] sm:%s2290] %v2302
                %v2304 = vld [vmem:[%s2300 + $0x8] sm:%s2290]
                %2305 = vst [vmem:[%s2301 + $0x8] sm:%s2290] %v2304
                %v2306 = vld [vmem:[%s2300 + $0x10] sm:%s2290]
                %2307 = vst [vmem:[%s2301 + $0x10] sm:%s2290] %v2306
                %v2308 = vld [vmem:[%s2300 + $0x18] sm:%s2290]
                %2309 = vst [vmem:[%s2301 + $0x18] sm:%s2290] %v2308
                %v2310 = vld [vmem:[%s2300 + $0x20] sm:%s2290]
                %2311 = vst [vmem:[%s2301 + $0x20] sm:%s2290] %v2310
                %v2312 = vld [vmem:[%s2300 + $0x28] sm:%s2290]
                %2313 = vst [vmem:[%s2301 + $0x28] sm:%s2290] %v2312
                %v2314 = vld [vmem:[%s2300 + $0x30] sm:%s2290]
                %2315 = vst [vmem:[%s2301 + $0x30] sm:%s2290] %v2314
                %v2316 = vld [vmem:[%s2300 + $0x38] sm:%s2290]
                %2317 = vst [vmem:[%s2301 + $0x38] sm:%s2290] %v2316
                %v2318 = vld [vmem:[%s2300 + $0x40] sm:%s2290]
                %2319 = vst [vmem:[%s2301 + $0x40] sm:%s2290] %v2318
                %v2320 = vld [vmem:[%s2300 + $0x48] sm:%s2290]
                %2321 = vst [vmem:[%s2301 + $0x48] sm:%s2290] %v2320
                %v2322 = vld [vmem:[%s2300 + $0x50] sm:%s2290]
                %2323 = vst [vmem:[%s2301 + $0x50] sm:%s2290] %v2322
                %v2324 = vld [vmem:[%s2300 + $0x58] sm:%s2290]
                %2325 = vst [vmem:[%s2301 + $0x58] sm:%s2290] %v2324
                %v2326 = vld [vmem:[%s2300 + $0x60] sm:%s2290]
                %2327 = vst [vmem:[%s2301 + $0x60] sm:%s2290] %v2326
                %s2328 = sadd.s32 1, %s2299
                %p2329 = scmp.ge.s32.totalorder %s2328, %s2291
                %s2330 = scalar_select %p2329, 0, %s2328
                %s2331 = smul.u32 %s2330, 104
                %s2332 = smul.u32 %s2330, 104
                %s2333 = scalar_lea.vmem %s2244, %s2331 [#allocation12]
                %s2334 = scalar_lea.vmem %s2281, %s2332
              $region85: #{tpu_custom_call.1} parent=79 // loop_footer
                %s2296 = sadd.s32 %s2294, 1
              $region86: #{tpu_custom_call.1} parent=79 // loop_footer_branch
                %2293 = sbr.rel target = $region82
              $region87: #{tpu_custom_call.1} parent=79 // loop_exit
                _
              %s2335 = sdiv.u32.pop %s2277, 13
              %s2336 = srem.u32.pop %s2277, 13
              %s2337 = smul.u32 %s2335, 13
              %s2338 = smul.u32 8, %s2337
              %s2339 = scalar_lea.vmem %s2244, %s2338 [#allocation12]
              %s2340 = smul.u32 8, %s2337
              %s2341 = scalar_lea.vmem %s2281, %s2340
              // While loop
              $region88: #{tpu_custom_call.1} parent=79 // loop_pre_header
                _
              $region89: #{tpu_custom_call.1} parent=79 // loop_header
                %s2343 = sphi 0, %s2345
                %p2344 = scmp.ge.s32.totalorder %s2343, %s2336
                %s2348 = sphi 0, %s2355
                %s2349 = sphi %s2339, %s2358
                %s2350 = sphi %s2341, %s2359
              $region90: #{tpu_custom_call.1} parent=79 // loop_header_branch
                %2347 = sbr.rel (%p2344) target = $region94
              $region91: #{tpu_custom_call.1} parent=79 // loop_body
                %v2351 = vld [vmem:[%s2349] sm:%s2290]
                %2352 = vst [vmem:[%s2350] sm:%s2290] %v2351
                %s2353 = sadd.s32 1, %s2348
                %p2354 = scmp.ge.s32.totalorder %s2353, %s2336
                %s2355 = scalar_select %p2354, 0, %s2353
                %s2356 = smul.u32 %s2355, 8
                %s2357 = smul.u32 %s2355, 8
                %s2358 = scalar_lea.vmem %s2339, %s2356 [#allocation12]
                %s2359 = scalar_lea.vmem %s2341, %s2357
              $region92: #{tpu_custom_call.1} parent=79 // loop_footer
                %s2345 = sadd.s32 %s2343, 1
              $region93: #{tpu_custom_call.1} parent=79 // loop_footer_branch
                %2342 = sbr.rel target = $region89
              $region94: #{tpu_custom_call.1} parent=79 // loop_exit
                _
            $region80: #{tpu_custom_call.1} parent=71 // pred_fallthru
              _
          $region72: #{tpu_custom_call.1} parent=67 // pred_fallthru
            _
          %2433 = vnop
        $region68: #{tpu_custom_call.1} parent=39 // pred_fallthru
          _
      $region40: #{tpu_custom_call.1} parent=5 // pred_fallthru
        _
      %p2434 = scmp.le.s32.totalorder 2, %s21
      // Predicated region
      $region117: #{tpu_custom_call.1} parent=5 // pred_check
        %p2435 = pneg %p2434
      $region118: #{tpu_custom_call.1} parent=5 // pred_check_branch
        %2437 = sbr.rel (%p2435) target = $region120
      $region119: #{tpu_custom_call.1} parent=5 // pred_region
        %s2438 = ssub.s32 %s21, 2
        // Predicated region
        $region121: #{tpu_custom_call.1} parent=119 // pred_check
          %p2439 = pneg %p160
        $region122: #{tpu_custom_call.1} parent=119 // pred_check_branch
          %2441 = sbr.rel (%p2439) target = $region124
        $region123: #{tpu_custom_call.1} parent=119 // pred_region
          %s2442 = sand.u32 %s145, 1
          %s2443 = scalar_lea.sflag [#allocation4], %s2442
          %s2444 = sand.u32 %s145, 1
          %s2445 = smul.addr %s2444, 208
          %s2446 = scalar_lea.vmem [#allocation11], %s2445
          %2448 = dma.done %s2443, 3328
        $region124: #{tpu_custom_call.1} parent=119 // pred_fallthru
          _
        // Predicated region
        $region125: #{tpu_custom_call.1} parent=119 // pred_check
          %p2449 = pneg %p186
        $region126: #{tpu_custom_call.1} parent=119 // pred_check_branch
          %2451 = sbr.rel (%p2449) target = $region128
        $region127: #{tpu_custom_call.1} parent=119 // pred_region
          %s2452 = sand.u32 %s171, 1
          %s2453 = sand.u32 %s171, 1
          %s2454 = smul.addr %s2453, 104
          %s2455 = scalar_lea.vmem [#allocation12], %s2454
        $region128: #{tpu_custom_call.1} parent=119 // pred_fallthru
          _
      $region120: #{tpu_custom_call.1} parent=5 // pred_fallthru
        _
    $region6: #{tpu_custom_call.1} parent=1 // loop_footer
      %s25 = sadd.s32 1, %s21
    $region7: #{tpu_custom_call.1} parent=1 // loop_footer_branch
      %20 = sbr.rel target = $region3
    $region8: #{tpu_custom_call.1} parent=1 // loop_exit
      _
    %2456 = vsyncpa [#allocation3], 1
    %s2457 = scalar_lea.sflag [#allocation3], 1
    %2458 = vsyncpa %s2457, 1
    %2459 = vsyncpa [#allocation6], 1
    %2460 = vsyncpa [#allocation9], 1
    %2461 = vsyncpa [#allocation4], 1
    %s2462 = scalar_lea.sflag [#allocation4], 1
    %2463 = vsyncpa %s2462, 1

</llo_original>
